<compile_context>
chip_gen: v7x
topology: tpu7x:2x2x1
jax: 0.10.0
libtpu: 0.0.40
codegen_flags: <defaults>
</compile_context>

<pallas_src>
import functools

import jax
import jax.numpy as jnp
from jax import lax
from jax.experimental import pallas as pl
from jax.experimental.pallas import tpu as pltpu

SCALES = (128.0, 256.0, 512.0)
ASPECT_RATIOS = (0.5, 1.0, 2.0)
# NOTE: the reference module calls `len(self.scales, self.aspect_ratios)` which
# is a bug (TypeError); the clear intent is len(scales) * len(aspect_ratios).
NUM_ANCHORS = len(SCALES) * len(ASPECT_RATIOS)


def _round_up(x, m):
    return (x + m - 1) // m * m


# ----------------------------------------------------------------------------
# Fused kernel: 9-tap accumulated 3x3 conv + bias + ReLU + fused 1x1 heads
# ----------------------------------------------------------------------------
def _rpn_fused_kernel(x_ref, wmat_ref, rb_ref, hw_ref, hb_ref, mask_ref,
                      out_ref, *, W):
    # x_ref    : (C_pad, N)         feature map, spatial (and maybe batch)
    #                               flattened onto lanes, batch-major blocks
    # wmat_ref : (9, C_pad, C_pad)  per-tap conv weights [tap, out, in]
    # rb_ref   : (C_pad, 1)         conv bias (f32)
    # hw_ref   : (HEAD, C_pad)      fused [cls ; bbox] 1x1 weights
    # hb_ref   : (HEAD, 1)          fused [cls ; bbox] biases (f32)
    # mask_ref : (8, 1, N)          boundary masks for the 8 non-center taps
    # out_ref  : (HEAD, N)          fused head output, lane-dense slab
    x = x_ref[...]                                             # (C_pad, N)
    n = x.shape[1]

    acc = jnp.zeros((x.shape[0], n), jnp.float32)
    m = 0
    for kh in range(3):
        for kw in range(3):
            s = (kh - 1) * W + (kw - 1)       # lane offset of this tap
            if s == 0:
                tap = x                        # center tap: no mask needed
            else:
                # out[p] = x[p + s] (circular); the circular wrap (incl. any
                # cross-batch wrap when batch is folded onto lanes) is killed
                # by the boundary mask, which also implements the conv's
                # zero 'same' padding.  XLU lane rotate -> free slot.
                rolled = pltpu.roll(x, (-s) % n, axis=1)
                tap = rolled * mask_ref[m]     # (1, N) broadcast over sublanes
                m += 1
            # 3x3 conv as 9 accumulating MXU matmuls; the shifted tap dies
            # immediately (no (9*C_pad, N) im2col buffer).
            acc = acc + jnp.dot(wmat_ref[kh * 3 + kw], tap,
                                preferred_element_type=jnp.float32)

    feat = jnp.maximum(acc + rb_ref[...], 0.0)                 # (C_pad, N) f32

    # Fused cls + bbox heads: a single MXU matmul, lane-dense output.
    heads = jnp.dot(hw_ref[...], feat.astype(hw_ref.dtype),
                    preferred_element_type=jnp.float32) + hb_ref[...]
    out_ref[...] = heads                                       # unmasked vst


# ----------------------------------------------------------------------------
# One-time parameter packing (hoisted out of the per-forward path)
# ----------------------------------------------------------------------------
def pack_rpn_params(params, *, compute_dtype=jnp.float32):
    """Repack PyTorch-layout RPN weights for the fused kernel. Call once."""
    C = params["rpn_w"].shape[1]
    A = NUM_ANCHORS
    C_pad = _round_up(C, 8)          # sublane alignment (no-op at C=512)
    HEAD = _round_up(5 * A, 8)       # 9 cls + 36 bbox rows -> 48 (aligned)

    # conv weight OIHW -> (tap, O, I), tap = kh*3 + kw, padded to C_pad.
    w = jnp.transpose(params["rpn_w"], (2, 3, 0, 1)).reshape(9, C, C)
    wmat = jnp.pad(w, ((0, 0), (0, C_pad - C), (0, C_pad - C)))
    wmat = wmat.astype(compute_dtype)
    rb = jnp.pad(params["rpn_b"], (0, C_pad - C))
    rb = rb.reshape(C_pad, 1).astype(jnp.float32)

    # Fused [cls ; bbox] 1x1 head weights: (5A, C) -> (HEAD, C_pad)
    cw = params["cls_w"][:, :, 0, 0]                           # (A, C)
    bw = params["box_w"][:, :, 0, 0]                           # (4A, C)
    hw = jnp.concatenate([cw, bw], axis=0)                     # (5A, C)
    hw = jnp.pad(hw, ((0, HEAD - 5 * A), (0, C_pad - C))).astype(compute_dtype)
    hb = jnp.concatenate([params["cls_b"], params["box_b"]], axis=0)
    hb = jnp.pad(hb, (0, HEAD - 5 * A)).reshape(HEAD, 1).astype(jnp.float32)

    return {"wmat": wmat, "rb": rb, "hw": hw, "hb": hb,
            "C": C, "C_pad": C_pad, "HEAD": HEAD,
            "compute_dtype": compute_dtype}


def _make_tap_masks(H, W, N, dtype):
    """(8, 1, N) boundary masks for the 8 non-center 3x3 taps (lane-only)."""
    HW = H * W
    pos = jnp.arange(N, dtype=jnp.int32)
    p = pos % HW                      # within-image lane position
    y = p // W
    xw = p % W
    masks = []
    for kh in range(3):
        for kw in range(3):
            dh, dw = kh - 1, kw - 1
            if dh == 0 and dw == 0:
                continue
            valid = ((y + dh >= 0) & (y + dh < H) &
                     (xw + dw >= 0) & (xw + dw < W))
            masks.append(valid)
    return jnp.stack(masks, axis=0).astype(dtype).reshape(8, 1, N)


# ----------------------------------------------------------------------------
# Fused RPN head
# ----------------------------------------------------------------------------
def rpn_head(feature_map_nchw, packed):
    """Fused RPN head. Input is NCHW (PyTorch convention).

    Returns (cls, box) with PyTorch conv-output layouts:
      cls: (B, A, H, W),  box: (B, A, 4, H, W).
    """
    B, C, H, W = feature_map_nchw.shape
    assert C == packed["C"]
    A = NUM_ANCHORS
    HW = H * W
    C_pad, HEAD = packed["C_pad"], packed["HEAD"]
    cdt = packed["compute_dtype"]

    # (B, C, H, W) -> (B, C_pad, H*W): spatial flatten is free metadata;
    # the channel pad only triggers for toy channel counts (C % 8 != 0).
    x = feature_map_nchw.reshape(B, C, HW)
    if C_pad != C:
        x = jnp.pad(x, ((0, 0), (0, C_pad - C), (0, 0)))
    x = x.astype(cdt)

    # Small feature maps: fold the batch onto the lane axis and run a single
    # grid step over (C_pad, B*HW) -- amortizes per-step overhead and fills
    # the MXU for the 48-row head matmul.  Large maps keep grid=(B,).
    fold_batch = (B * HW) <= 4096
    if fold_batch:
        x = jnp.transpose(x, (1, 0, 2)).reshape(1, C_pad, B * HW)
        G, N = 1, B * HW
    else:
        G, N = B, HW

    masks = _make_tap_masks(H, W, N, cdt)                      # (8, 1, N)

    # TODO(synk): for production-scale RPN inputs (C=512, HW ~ 2k) add a
    # spatial lane-tiling grid axis (tiles <= 1024 lanes with a +/-(W+1) halo
    # via the masks), single-buffer the grid-invariant weight inputs
    # (pipeline_mode=pl.Buffered(1)) and set vmem_limit_bytes so the working
    # set fits v7x's 64 MiB VMEM while both TensorCores get work.
    kernel = functools.partial(_rpn_fused_kernel, W=W)
    heads = pl.pallas_call(
        kernel,
        out_shape=jax.ShapeDtypeStruct((G, HEAD, N), jnp.float32),
        grid_spec=pltpu.PrefetchScalarGridSpec(
            num_scalar_prefetch=0,
            grid=(G,),
            in_specs=[
                pl.BlockSpec((None, C_pad, N), lambda g: (g, 0, 0)),
                pl.BlockSpec((9, C_pad, C_pad), lambda g: (0, 0, 0)),
                pl.BlockSpec((C_pad, 1), lambda g: (0, 0)),
                pl.BlockSpec((HEAD, C_pad), lambda g: (0, 0)),
                pl.BlockSpec((HEAD, 1), lambda g: (0, 0)),
                pl.BlockSpec((8, 1, N), lambda g: (0, 0, 0)),
            ],
            out_specs=pl.BlockSpec((None, HEAD, N), lambda g: (g, 0, 0)),
        ),
        compiler_params=pltpu.CompilerParams(
            dimension_semantics=("parallel",)),
    )(x, packed["wmat"], packed["rb"], packed["hw"], packed["hb"], masks)

    if fold_batch:
        heads = heads.reshape(HEAD, B, HW).transpose(1, 0, 2)  # (B, HEAD, HW)

    cls = heads[:, :A, :].reshape(B, A, H, W)
    box = heads[:, A:5 * A, :].reshape(B, A, 4, H, W)
    return cls, box


# ----------------------------------------------------------------------------
# Anchor generation: tiny constant math, plain JAX (no pallas_call needed)
# ----------------------------------------------------------------------------
def generate_anchors(image_shape, feat_shape):
    grid_h, grid_w = feat_shape[-2], feat_shape[-1]
    img_h, img_w = image_shape[-2], image_shape[-1]
    stride_h = img_h // grid_h
    stride_w = img_w // grid_w

    scales = jnp.asarray(SCALES, jnp.float32)
    ars = jnp.asarray(ASPECT_RATIOS, jnp.float32)
    h = jnp.sqrt(ars)
    w = 1.0 / h
    ws = (w[:, None] * scales[None, :]).reshape(-1)
    hs = (h[:, None] * scales[None, :]).reshape(-1)
    base = jnp.round(jnp.stack([-ws, -hs, ws, hs], axis=1) / 2.0)   # (A, 4)

    sx = jnp.arange(grid_w, dtype=jnp.int32) * stride_w
    sy = jnp.arange(grid_h, dtype=jnp.int32) * stride_h
    sy, sx = jnp.meshgrid(sy, sx, indexing="ij")
    shifts = jnp.stack([sx.reshape(-1), sy.reshape(-1),
                        sx.reshape(-1), sy.reshape(-1)], axis=1)
    anchors = (shifts[:, None, :].astype(jnp.float32) +
               base[None, :, :]).reshape(-1, 4)
    return anchors


# ----------------------------------------------------------------------------
# Forward (matches RegionProposalNetwork.forward semantics)
# ----------------------------------------------------------------------------
def rpn_forward(image, feature_map, target, packed_params):
    del target  # unused by the reference forward's computation
    cls, box = rpn_head(feature_map, packed_params)

    anchors = generate_anchors(image.shape, feature_map.shape)

    # torch: (B, A, H, W).permute(0, 2, 3, 1)
    classification_scores = jnp.transpose(cls, (0, 2, 3, 1))
    # torch: (B, 4A, H, W).view(B, A, 4, H, W).permute(0,3,4,1,2).reshape(-1,4)
    box_transformation_preds = jnp.transpose(box, (0, 3, 4, 1, 2)).reshape(-1, 4)

    # TODO(synk): the original forward has no return statement (returns None);
    # we return the computed tensors so the kernel output can be inspected.
    return classification_scores, box_transformation_preds, anchors


# ----------------------------------------------------------------------------
# Pure-JAX reference for correctness checking
# ----------------------------------------------------------------------------
def rpn_forward_ref(image, feature_map, params):
    dn = ("NCHW", "OIHW", "NCHW")
    feat = lax.conv_general_dilated(
        feature_map, params["rpn_w"], (1, 1), ((1, 1), (1, 1)),
        dimension_numbers=dn) + params["rpn_b"][None, :, None, None]
    feat = jax.nn.relu(feat)
    cls = lax.conv_general_dilated(
        feat, params["cls_w"], (1, 1), "VALID",
        dimension_numbers=dn) + params["cls_b"][None, :, None, None]
    box = lax.conv_general_dilated(
        feat, params["box_w"], (1, 1), "VALID",
        dimension_numbers=dn) + params["box_b"][None, :, None, None]
    B, A, H, W = cls.shape
    cls = jnp.transpose(cls, (0, 2, 3, 1))
    box = box.reshape(B, A, 4, H, W)
    box = jnp.transpose(box, (0, 3, 4, 1, 2)).reshape(-1, 4)
    anchors = generate_anchors(image.shape, feature_map.shape)
    return cls, box, anchors


if __name__ == "__main__":
    key = jax.random.PRNGKey(0)
    keys = jax.random.split(key, 9)

    # Small shapes consistent with the module: batch=2, in_channels=4, 16x16
    # feature map, 128x128 image -> stride 8.
    B, C, H, W = 2, 4, 16, 16
    IMG_H, IMG_W = 128, 128
    A = NUM_ANCHORS

    image = jax.random.normal(keys[0], (B, 3, IMG_H, IMG_W), jnp.float32)
    feature_map = jax.random.normal(keys[1], (B, C, H, W), jnp.float32)
    target = {
        "bboxes": jax.random.uniform(keys[2], (B, 6, 4), jnp.float32) * 64.0,
        "labels": jnp.zeros((B, 6), jnp.int32),
    }

    # Deterministic parameter init (PyTorch OIHW weight layout, synthetic).
    params = {
        "rpn_w": 0.1 * jax.random.normal(keys[3], (C, C, 3, 3), jnp.float32),
        "rpn_b": 0.1 * jax.random.normal(keys[4], (C,), jnp.float32),
        "cls_w": 0.1 * jax.random.normal(keys[5], (A, C, 1, 1), jnp.float32),
        "cls_b": 0.1 * jax.random.normal(keys[6], (A,), jnp.float32),
        "box_w": 0.1 * jax.random.normal(keys[7], (4 * A, C, 1, 1), jnp.float32),
        "box_b": 0.1 * jax.random.normal(keys[8], (4 * A,), jnp.float32),
    }

    # One-time weight packing (hoisted out of the forward path).
    # compute_dtype=jnp.bfloat16 is the production choice on v6e/v7x (2-4x MXU
    # throughput); f32 is used here so the tight reference check below holds.
    packed = pack_rpn_params(params, compute_dtype=jnp.float32)

    cls_out, box_out, anchors_out = rpn_forward(image, feature_map, target,
                                                packed)
    jax.block_until_ready((cls_out, box_out, anchors_out))

    cls_ref, box_ref, anchors_ref = rpn_forward_ref(image, feature_map, params)
    assert cls_out.shape == (B, H, W, A)
    assert box_out.shape == (B * H * W * A, 4)
    assert anchors_out.shape == (H * W * A, 4)
    assert jnp.allclose(cls_out, cls_ref, atol=1e-4, rtol=1e-4)
    assert jnp.allclose(box_out, box_ref, atol=1e-4, rtol=1e-4)
    assert jnp.allclose(anchors_out, anchors_ref, atol=1e-4, rtol=1e-4)

    print("KERNEL_OK")
</pallas_src>

<mosaic_0001>
module attributes {stable_mosaic.version = 11 : i64} {
  func.func @_rpn_fused_kernel(%arg0: i32, %arg1: memref<1x8x512xf32, #tpu.memory_space<vmem>>, %arg2: memref<9x8x8xf32, #tpu.memory_space<vmem>>, %arg3: memref<8x1xf32, #tpu.memory_space<vmem>>, %arg4: memref<48x8xf32, #tpu.memory_space<vmem>>, %arg5: memref<48x1xf32, #tpu.memory_space<vmem>>, %arg6: memref<8x1x512xf32, #tpu.memory_space<vmem>>, %arg7: memref<1x48x512xf32, #tpu.memory_space<vmem>>) attributes {dimension_semantics = [#tpu.dimension_semantics<parallel>], iteration_bounds = array<i64: 1>, scalar_prefetch = 0 : i64, scratch_operands = 0 : i64, tpu.core_type = #tpu.core_type<tc>, window_params = [{transform_indices = @transform_0, window_bounds = array<i64: 1, 8, 512>}, {pipeline_mode = #tpu.pipeline_mode<synchronous>, transform_indices = @transform_1, window_bounds = array<i64: 9, 8, 8>}, {pipeline_mode = #tpu.pipeline_mode<synchronous>, transform_indices = @transform_2, window_bounds = array<i64: 8, 1>}, {pipeline_mode = #tpu.pipeline_mode<synchronous>, transform_indices = @transform_3, window_bounds = array<i64: 48, 8>}, {pipeline_mode = #tpu.pipeline_mode<synchronous>, transform_indices = @transform_4, window_bounds = array<i64: 48, 1>}, {pipeline_mode = #tpu.pipeline_mode<synchronous>, transform_indices = @transform_5, window_bounds = array<i64: 8, 1, 512>}, {transform_indices = @transform_6, window_bounds = array<i64: 1, 48, 512>}]} {
    %c0 = arith.constant 0 : index
    %c0_0 = arith.constant 0 : index
    %c0_1 = arith.constant 0 : index
    %0 = vector.load %arg1[%c0, %c0_0, %c0_1] : memref<1x8x512xf32, #tpu.memory_space<vmem>>, vector<1x8x512xf32>
    %1 = vector.shape_cast %0 : vector<1x8x512xf32> to vector<8x512xf32>
    %cst = arith.constant 0.000000e+00 : f32
    %2 = vector.broadcast %cst : f32 to vector<8x512xf32>
    %c17_i32 = arith.constant 17 : i32
    %3 = tpu.dynamic_rotate %1 by %c17_i32 dim 1 : vector<8x512xf32>, i32 -> vector<8x512xf32>
    %c0_2 = arith.constant 0 : index
    %c0_3 = arith.constant 0 : index
    %c0_4 = arith.constant 0 : index
    %4 = vector.load %arg6[%c0_2, %c0_3, %c0_4] : memref<8x1x512xf32, #tpu.memory_space<vmem>>, vector<1x1x512xf32>
    %5 = vector.shape_cast %4 : vector<1x1x512xf32> to vector<1x512xf32>
    %6 = vector.broadcast %5 : vector<1x512xf32> to vector<8x512xf32>
    %7 = arith.mulf %3, %6 : vector<8x512xf32>
    %c0_5 = arith.constant 0 : index
    %c0_6 = arith.constant 0 : index
    %c0_7 = arith.constant 0 : index
    %8 = vector.load %arg2[%c0_5, %c0_6, %c0_7] : memref<9x8x8xf32, #tpu.memory_space<vmem>>, vector<1x8x8xf32>
    %9 = vector.shape_cast %8 : vector<1x8x8xf32> to vector<8x8xf32>
    %cst_8 = arith.constant dense<0.000000e+00> : vector<8x512xf32>
    %10 = tpu.matmul %9, %7, %cst_8 {dimension_numbers = #tpu.dot_dimension_numbers<[1], [0], [0], [1], [0, 0, 1, 1], [], []>} : vector<8x8xf32>, vector<8x512xf32>, vector<8x512xf32> -> vector<8x512xf32>
    %11 = arith.addf %2, %10 : vector<8x512xf32>
    %c16_i32 = arith.constant 16 : i32
    %12 = tpu.dynamic_rotate %1 by %c16_i32 dim 1 : vector<8x512xf32>, i32 -> vector<8x512xf32>
    %c1 = arith.constant 1 : index
    %c0_9 = arith.constant 0 : index
    %c0_10 = arith.constant 0 : index
    %13 = vector.load %arg6[%c1, %c0_9, %c0_10] : memref<8x1x512xf32, #tpu.memory_space<vmem>>, vector<1x1x512xf32>
    %14 = vector.shape_cast %13 : vector<1x1x512xf32> to vector<1x512xf32>
    %15 = vector.broadcast %14 : vector<1x512xf32> to vector<8x512xf32>
    %16 = arith.mulf %12, %15 : vector<8x512xf32>
    %c1_11 = arith.constant 1 : index
    %c0_12 = arith.constant 0 : index
    %c0_13 = arith.constant 0 : index
    %17 = vector.load %arg2[%c1_11, %c0_12, %c0_13] : memref<9x8x8xf32, #tpu.memory_space<vmem>>, vector<1x8x8xf32>
    %18 = vector.shape_cast %17 : vector<1x8x8xf32> to vector<8x8xf32>
    %cst_14 = arith.constant dense<0.000000e+00> : vector<8x512xf32>
    %19 = tpu.matmul %18, %16, %cst_14 {dimension_numbers = #tpu.dot_dimension_numbers<[1], [0], [0], [1], [0, 0, 1, 1], [], []>} : vector<8x8xf32>, vector<8x512xf32>, vector<8x512xf32> -> vector<8x512xf32>
    %20 = arith.addf %11, %19 : vector<8x512xf32>
    %c15_i32 = arith.constant 15 : i32
    %21 = tpu.dynamic_rotate %1 by %c15_i32 dim 1 : vector<8x512xf32>, i32 -> vector<8x512xf32>
    %c2 = arith.constant 2 : index
    %c0_15 = arith.constant 0 : index
    %c0_16 = arith.constant 0 : index
    %22 = vector.load %arg6[%c2, %c0_15, %c0_16] : memref<8x1x512xf32, #tpu.memory_space<vmem>>, vector<1x1x512xf32>
    %23 = vector.shape_cast %22 : vector<1x1x512xf32> to vector<1x512xf32>
    %24 = vector.broadcast %23 : vector<1x512xf32> to vector<8x512xf32>
    %25 = arith.mulf %21, %24 : vector<8x512xf32>
    %c2_17 = arith.constant 2 : index
    %c0_18 = arith.constant 0 : index
    %c0_19 = arith.constant 0 : index
    %26 = vector.load %arg2[%c2_17, %c0_18, %c0_19] : memref<9x8x8xf32, #tpu.memory_space<vmem>>, vector<1x8x8xf32>
    %27 = vector.shape_cast %26 : vector<1x8x8xf32> to vector<8x8xf32>
    %cst_20 = arith.constant dense<0.000000e+00> : vector<8x512xf32>
    %28 = tpu.matmul %27, %25, %cst_20 {dimension_numbers = #tpu.dot_dimension_numbers<[1], [0], [0], [1], [0, 0, 1, 1], [], []>} : vector<8x8xf32>, vector<8x512xf32>, vector<8x512xf32> -> vector<8x512xf32>
    %29 = arith.addf %20, %28 : vector<8x512xf32>
    %c1_i32 = arith.constant 1 : i32
    %30 = tpu.dynamic_rotate %1 by %c1_i32 dim 1 : vector<8x512xf32>, i32 -> vector<8x512xf32>
    %c3 = arith.constant 3 : index
    %c0_21 = arith.constant 0 : index
    %c0_22 = arith.constant 0 : index
    %31 = vector.load %arg6[%c3, %c0_21, %c0_22] : memref<8x1x512xf32, #tpu.memory_space<vmem>>, vector<1x1x512xf32>
    %32 = vector.shape_cast %31 : vector<1x1x512xf32> to vector<1x512xf32>
    %33 = vector.broadcast %32 : vector<1x512xf32> to vector<8x512xf32>
    %34 = arith.mulf %30, %33 : vector<8x512xf32>
    %c3_23 = arith.constant 3 : index
    %c0_24 = arith.constant 0 : index
    %c0_25 = arith.constant 0 : index
    %35 = vector.load %arg2[%c3_23, %c0_24, %c0_25] : memref<9x8x8xf32, #tpu.memory_space<vmem>>, vector<1x8x8xf32>
    %36 = vector.shape_cast %35 : vector<1x8x8xf32> to vector<8x8xf32>
    %cst_26 = arith.constant dense<0.000000e+00> : vector<8x512xf32>
    %37 = tpu.matmul %36, %34, %cst_26 {dimension_numbers = #tpu.dot_dimension_numbers<[1], [0], [0], [1], [0, 0, 1, 1], [], []>} : vector<8x8xf32>, vector<8x512xf32>, vector<8x512xf32> -> vector<8x512xf32>
    %38 = arith.addf %29, %37 : vector<8x512xf32>
    %c4 = arith.constant 4 : index
    %c0_27 = arith.constant 0 : index
    %c0_28 = arith.constant 0 : index
    %39 = vector.load %arg2[%c4, %c0_27, %c0_28] : memref<9x8x8xf32, #tpu.memory_space<vmem>>, vector<1x8x8xf32>
    %40 = vector.shape_cast %39 : vector<1x8x8xf32> to vector<8x8xf32>
    %cst_29 = arith.constant dense<0.000000e+00> : vector<8x512xf32>
    %41 = tpu.matmul %40, %1, %cst_29 {dimension_numbers = #tpu.dot_dimension_numbers<[1], [0], [0], [1], [0, 0, 1, 1], [], []>} : vector<8x8xf32>, vector<8x512xf32>, vector<8x512xf32> -> vector<8x512xf32>
    %42 = arith.addf %38, %41 : vector<8x512xf32>
    %c511_i32 = arith.constant 511 : i32
    %43 = tpu.dynamic_rotate %1 by %c511_i32 dim 1 : vector<8x512xf32>, i32 -> vector<8x512xf32>
    %c4_30 = arith.constant 4 : index
    %c0_31 = arith.constant 0 : index
    %c0_32 = arith.constant 0 : index
    %44 = vector.load %arg6[%c4_30, %c0_31, %c0_32] : memref<8x1x512xf32, #tpu.memory_space<vmem>>, vector<1x1x512xf32>
    %45 = vector.shape_cast %44 : vector<1x1x512xf32> to vector<1x512xf32>
    %46 = vector.broadcast %45 : vector<1x512xf32> to vector<8x512xf32>
    %47 = arith.mulf %43, %46 : vector<8x512xf32>
    %c5 = arith.constant 5 : index
    %c0_33 = arith.constant 0 : index
    %c0_34 = arith.constant 0 : index
    %48 = vector.load %arg2[%c5, %c0_33, %c0_34] : memref<9x8x8xf32, #tpu.memory_space<vmem>>, vector<1x8x8xf32>
    %49 = vector.shape_cast %48 : vector<1x8x8xf32> to vector<8x8xf32>
    %cst_35 = arith.constant dense<0.000000e+00> : vector<8x512xf32>
    %50 = tpu.matmul %49, %47, %cst_35 {dimension_numbers = #tpu.dot_dimension_numbers<[1], [0], [0], [1], [0, 0, 1, 1], [], []>} : vector<8x8xf32>, vector<8x512xf32>, vector<8x512xf32> -> vector<8x512xf32>
    %51 = arith.addf %42, %50 : vector<8x512xf32>
    %c497_i32 = arith.constant 497 : i32
    %52 = tpu.dynamic_rotate %1 by %c497_i32 dim 1 : vector<8x512xf32>, i32 -> vector<8x512xf32>
    %c5_36 = arith.constant 5 : index
    %c0_37 = arith.constant 0 : index
    %c0_38 = arith.constant 0 : index
    %53 = vector.load %arg6[%c5_36, %c0_37, %c0_38] : memref<8x1x512xf32, #tpu.memory_space<vmem>>, vector<1x1x512xf32>
    %54 = vector.shape_cast %53 : vector<1x1x512xf32> to vector<1x512xf32>
    %55 = vector.broadcast %54 : vector<1x512xf32> to vector<8x512xf32>
    %56 = arith.mulf %52, %55 : vector<8x512xf32>
    %c6 = arith.constant 6 : index
    %c0_39 = arith.constant 0 : index
    %c0_40 = arith.constant 0 : index
    %57 = vector.load %arg2[%c6, %c0_39, %c0_40] : memref<9x8x8xf32, #tpu.memory_space<vmem>>, vector<1x8x8xf32>
    %58 = vector.shape_cast %57 : vector<1x8x8xf32> to vector<8x8xf32>
    %cst_41 = arith.constant dense<0.000000e+00> : vector<8x512xf32>
    %59 = tpu.matmul %58, %56, %cst_41 {dimension_numbers = #tpu.dot_dimension_numbers<[1], [0], [0], [1], [0, 0, 1, 1], [], []>} : vector<8x8xf32>, vector<8x512xf32>, vector<8x512xf32> -> vector<8x512xf32>
    %60 = arith.addf %51, %59 : vector<8x512xf32>
    %c496_i32 = arith.constant 496 : i32
    %61 = tpu.dynamic_rotate %1 by %c496_i32 dim 1 : vector<8x512xf32>, i32 -> vector<8x512xf32>
    %c6_42 = arith.constant 6 : index
    %c0_43 = arith.constant 0 : index
    %c0_44 = arith.constant 0 : index
    %62 = vector.load %arg6[%c6_42, %c0_43, %c0_44] : memref<8x1x512xf32, #tpu.memory_space<vmem>>, vector<1x1x512xf32>
    %63 = vector.shape_cast %62 : vector<1x1x512xf32> to vector<1x512xf32>
    %64 = vector.broadcast %63 : vector<1x512xf32> to vector<8x512xf32>
    %65 = arith.mulf %61, %64 : vector<8x512xf32>
    %c7 = arith.constant 7 : index
    %c0_45 = arith.constant 0 : index
    %c0_46 = arith.constant 0 : index
    %66 = vector.load %arg2[%c7, %c0_45, %c0_46] : memref<9x8x8xf32, #tpu.memory_space<vmem>>, vector<1x8x8xf32>
    %67 = vector.shape_cast %66 : vector<1x8x8xf32> to vector<8x8xf32>
    %cst_47 = arith.constant dense<0.000000e+00> : vector<8x512xf32>
    %68 = tpu.matmul %67, %65, %cst_47 {dimension_numbers = #tpu.dot_dimension_numbers<[1], [0], [0], [1], [0, 0, 1, 1], [], []>} : vector<8x8xf32>, vector<8x512xf32>, vector<8x512xf32> -> vector<8x512xf32>
    %69 = arith.addf %60, %68 : vector<8x512xf32>
    %c495_i32 = arith.constant 495 : i32
    %70 = tpu.dynamic_rotate %1 by %c495_i32 dim 1 : vector<8x512xf32>, i32 -> vector<8x512xf32>
    %c7_48 = arith.constant 7 : index
    %c0_49 = arith.constant 0 : index
    %c0_50 = arith.constant 0 : index
    %71 = vector.load %arg6[%c7_48, %c0_49, %c0_50] : memref<8x1x512xf32, #tpu.memory_space<vmem>>, vector<1x1x512xf32>
    %72 = vector.shape_cast %71 : vector<1x1x512xf32> to vector<1x512xf32>
    %73 = vector.broadcast %72 : vector<1x512xf32> to vector<8x512xf32>
    %74 = arith.mulf %70, %73 : vector<8x512xf32>
    %c8 = arith.constant 8 : index
    %c0_51 = arith.constant 0 : index
    %c0_52 = arith.constant 0 : index
    %75 = vector.load %arg2[%c8, %c0_51, %c0_52] : memref<9x8x8xf32, #tpu.memory_space<vmem>>, vector<1x8x8xf32>
    %76 = vector.shape_cast %75 : vector<1x8x8xf32> to vector<8x8xf32>
    %cst_53 = arith.constant dense<0.000000e+00> : vector<8x512xf32>
    %77 = tpu.matmul %76, %74, %cst_53 {dimension_numbers = #tpu.dot_dimension_numbers<[1], [0], [0], [1], [0, 0, 1, 1], [], []>} : vector<8x8xf32>, vector<8x512xf32>, vector<8x512xf32> -> vector<8x512xf32>
    %78 = arith.addf %69, %77 : vector<8x512xf32>
    %c0_54 = arith.constant 0 : index
    %c0_55 = arith.constant 0 : index
    %79 = vector.load %arg3[%c0_54, %c0_55] : memref<8x1xf32, #tpu.memory_space<vmem>>, vector<8x1xf32>
    %80 = vector.broadcast %79 : vector<8x1xf32> to vector<8x512xf32>
    %81 = arith.addf %78, %80 : vector<8x512xf32>
    %cst_56 = arith.constant 0.000000e+00 : f32
    %82 = vector.broadcast %cst_56 : f32 to vector<8x512xf32>
    %83 = arith.maximumf %81, %82 : vector<8x512xf32>
    %c0_57 = arith.constant 0 : index
    %c0_58 = arith.constant 0 : index
    %84 = vector.load %arg4[%c0_57, %c0_58] : memref<48x8xf32, #tpu.memory_space<vmem>>, vector<48x8xf32>
    %cst_59 = arith.constant dense<0.000000e+00> : vector<48x512xf32>
    %85 = tpu.matmul %84, %83, %cst_59 {dimension_numbers = #tpu.dot_dimension_numbers<[1], [0], [0], [1], [0, 0, 1, 1], [], []>} : vector<48x8xf32>, vector<8x512xf32>, vector<48x512xf32> -> vector<48x512xf32>
    %c0_60 = arith.constant 0 : index
    %c0_61 = arith.constant 0 : index
    %86 = vector.load %arg5[%c0_60, %c0_61] : memref<48x1xf32, #tpu.memory_space<vmem>>, vector<48x1xf32>
    %87 = vector.broadcast %86 : vector<48x1xf32> to vector<48x512xf32>
    %88 = arith.addf %85, %87 : vector<48x512xf32>
    %c0_62 = arith.constant 0 : index
    %c0_63 = arith.constant 0 : index
    %c0_64 = arith.constant 0 : index
    %89 = vector.load %arg7[%c0_62, %c0_63, %c0_64] : memref<1x48x512xf32, #tpu.memory_space<vmem>>, vector<1x48x512xf32>
    %90 = vector.shape_cast %89 : vector<1x48x512xf32> to vector<48x512xf32>
    %91 = vector.shape_cast %88 : vector<48x512xf32> to vector<1x48x512xf32>
    tpu.vector_store %arg7[%c0_62, %c0_63, %c0_64], %91 {strides = array<i32>} : memref<1x48x512xf32, #tpu.memory_space<vmem>>, vector<1x48x512xf32>,
    return
  }
  func.func @transform_0(%arg0: i32) -> (i32, i32, i32) {
    %c0_i32 = arith.constant 0 : i32
    %c0_i32_0 = arith.constant 0 : i32
    %c0_i32_1 = arith.constant 0 : i32
    return %arg0, %c0_i32, %c0_i32_0 : i32, i32, i32
  }
  func.func @transform_1(%arg0: i32) -> (i32, i32, i32) {
    %c0_i32 = arith.constant 0 : i32
    %c0_i32_0 = arith.constant 0 : i32
    %c0_i32_1 = arith.constant 0 : i32
    %c0_i32_2 = arith.constant 0 : i32
    return %c0_i32, %c0_i32_0, %c0_i32_1 : i32, i32, i32
  }
  func.func @transform_2(%arg0: i32) -> (i32, i32) {
    %c0_i32 = arith.constant 0 : i32
    %c0_i32_0 = arith.constant 0 : i32
    %c0_i32_1 = arith.constant 0 : i32
    return %c0_i32, %c0_i32_0 : i32, i32
  }
  func.func @transform_3(%arg0: i32) -> (i32, i32) {
    %c0_i32 = arith.constant 0 : i32
    %c0_i32_0 = arith.constant 0 : i32
    %c0_i32_1 = arith.constant 0 : i32
    return %c0_i32, %c0_i32_0 : i32, i32
  }
  func.func @transform_4(%arg0: i32) -> (i32, i32) {
    %c0_i32 = arith.constant 0 : i32
    %c0_i32_0 = arith.constant 0 : i32
    %c0_i32_1 = arith.constant 0 : i32
    return %c0_i32, %c0_i32_0 : i32, i32
  }
  func.func @transform_5(%arg0: i32) -> (i32, i32, i32) {
    %c0_i32 = arith.constant 0 : i32
    %c0_i32_0 = arith.constant 0 : i32
    %c0_i32_1 = arith.constant 0 : i32
    %c0_i32_2 = arith.constant 0 : i32
    return %c0_i32, %c0_i32_0, %c0_i32_1 : i32, i32, i32
  }
  func.func @transform_6(%arg0: i32) -> (i32, i32, i32) {
    %c0_i32 = arith.constant 0 : i32
    %c0_i32_0 = arith.constant 0 : i32
    %c0_i32_1 = arith.constant 0 : i32
    return %arg0, %c0_i32, %c0_i32_0 : i32, i32, i32
  }
}

</mosaic_0001>

<llo_original>
// kernel: tpu_custom_call.1
$region0: #{tpu_custom_call.1}
  #allocation0 [shape = 'u32[]', space=smem, size = 0x4, offset = 0x4, fixed_abs, tag = 'smem constant byte address 0x4 - core index']
  #allocation1 [shape = 'u32[144,128]{1,0:T(1,128)}', space=vmem, size = 0x12000, scoped, tag = 'internal scratch']
  %s0 = inlined_call_operand.vmem [shape: f32[1,8,512], index: 0, kind: input, shape index: {}]
  %s1 = inlined_call_operand.vmem [shape: f32[9,8,8], index: 1, kind: input, shape index: {}]
  %s2 = inlined_call_operand.vmem [shape: f32[8,1], index: 2, kind: input, shape index: {}]
  %s3 = inlined_call_operand.vmem [shape: f32[48,8], index: 3, kind: input, shape index: {}]
  %s4 = inlined_call_operand.vmem [shape: f32[48,1], index: 4, kind: input, shape index: {}]
  %s5 = inlined_call_operand.vmem [shape: f32[8,1,512], index: 5, kind: input, shape index: {}]
  %s6 = inlined_call_operand.hbm [shape: f32[1,48,512], index: 6, kind: output, shape index: {}]
  %s7 = sld [smem:[#allocation0]]
  $region34: #{tpu_custom_call.1} parent=0
    _
  %s9 = ssub.s32 1, %s7
  %s10 = scalar_select 0, %s9, %s7
  $region1: #{tpu_custom_call.1} parent=0
    #allocation2 [shape = 'u8[98304]{0}', space=vmem, size = 0x18000, scoped, tag = 'output window, operand 0, single buffered']
    #allocation3 [shape = 's32[1]{0}', space=sflag, size = 0x4, scoped, tag = 'scoped memory for tpu_custom_call.1']
    %11 = vsyncpa [#allocation3], 0
    // Predicated region
    $region2: #{tpu_custom_call.1} parent=1 // pred_check
      _
    $region3: #{tpu_custom_call.1} parent=1 // pred_check_branch
      %13 = sbr.rel (0) target = $region5
    $region4: #{tpu_custom_call.1} parent=1 // pred_region
      _
    $region5: #{tpu_custom_call.1} parent=1 // pred_fallthru
      _
    // Predicated region
    $region6: #{tpu_custom_call.1} parent=1 // pred_check
      _
    $region7: #{tpu_custom_call.1} parent=1 // pred_check_branch
      %15 = sbr.rel (0) target = $region9
    $region8: #{tpu_custom_call.1} parent=1 // pred_region
      _
    $region9: #{tpu_custom_call.1} parent=1 // pred_fallthru
      _
    // Predicated region
    $region10: #{tpu_custom_call.1} parent=1 // pred_check
      _
    $region11: #{tpu_custom_call.1} parent=1 // pred_check_branch
      %17 = sbr.rel (0) target = $region13
    $region12: #{tpu_custom_call.1} parent=1 // pred_region
      _
    $region13: #{tpu_custom_call.1} parent=1 // pred_fallthru
      _
    // Predicated region
    $region14: #{tpu_custom_call.1} parent=1 // pred_check
      _
    $region15: #{tpu_custom_call.1} parent=1 // pred_check_branch
      %19 = sbr.rel (0) target = $region17
    $region16: #{tpu_custom_call.1} parent=1 // pred_region
      _
    $region17: #{tpu_custom_call.1} parent=1 // pred_fallthru
      _
    // Predicated region
    $region18: #{tpu_custom_call.1} parent=1 // pred_check
      _
    $region19: #{tpu_custom_call.1} parent=1 // pred_check_branch
      %21 = sbr.rel (0) target = $region21
    $region20: #{tpu_custom_call.1} parent=1 // pred_region
      _
    $region21: #{tpu_custom_call.1} parent=1 // pred_fallthru
      _
    // Predicated region
    $region22: #{tpu_custom_call.1} parent=1 // pred_check
      _
    $region23: #{tpu_custom_call.1} parent=1 // pred_check_branch
      %23 = sbr.rel (0) target = $region25
    $region24: #{tpu_custom_call.1} parent=1 // pred_region
      _
    $region25: #{tpu_custom_call.1} parent=1 // pred_fallthru
      _
    %v24 = vld [vmem:[%s0] sm:$0xff]
    %v25 = vld [vmem:[%s0 + $0x8] sm:$0xff]
    %v26 = vld [vmem:[%s0 + $0x10] sm:$0xff]
    %v27 = vld [vmem:[%s0 + $0x18] sm:$0xff]
    %28 = vrot.lane.b32.xlu0 %v24, 17
    %v29 = vpop.permute.xlu0 %28
    %30 = vrot.lane.b32.xlu0 %v25, 17
    %v31 = vpop.permute.xlu0 %30
    %32 = vrot.lane.b32.xlu0 %v26, 17
    %v33 = vpop.permute.xlu0 %32
    %34 = vrot.lane.b32.xlu0 %v27, 17
    %v35 = vpop.permute.xlu0 %34
    %v36 = vlaneseq
    %v37 = vand.u32 %v36, 127
    %vm38 = vcmp.lt.s32.totalorder %v37, 17
    %v39 = vsel %vm38, %v33, %v35
    %v40 = vsel %vm38, %v31, %v33
    %v41 = vsel %vm38, %v29, %v31
    %v42 = vsel %vm38, %v35, %v29
    %v43 = vld [vmem:[%s5] sm:$0xf]
    %v45 = vlaneseq
    %v46 = vshrl.u32 %v45, 7
    %v47 = vsub.s32 0, %v46
    %v48 = vrot.slane %v43, %v47
    %v49 = vlaneseq
    %v50 = vshrl.u32 %v49, 7
    %v51 = vsub.s32 1, %v50
    %v52 = vrot.slane %v43, %v51
    %v53 = vlaneseq
    %v54 = vshrl.u32 %v53, 7
    %v55 = vsub.s32 2, %v54
    %v56 = vrot.slane %v43, %v55
    %v57 = vlaneseq
    %v58 = vshrl.u32 %v57, 7
    %v59 = vsub.s32 3, %v58
    %v60 = vrot.slane %v43, %v59
    %v65 = vmul.f32 %v42, %v48
    %v66 = vmul.f32 %v41, %v52
    %v67 = vmul.f32 %v40, %v56
    %v68 = vmul.f32 %v39, %v60
    %v69 = vld [vmem:[%s1] sm:$0xff]
    %70 = vrot.lane.b32.xlu0 %v24, 16
    %v71 = vpop.permute.xlu0 %70
    %72 = vrot.lane.b32.xlu0 %v25, 16
    %v73 = vpop.permute.xlu0 %72
    %74 = vrot.lane.b32.xlu0 %v26, 16
    %v75 = vpop.permute.xlu0 %74
    %76 = vrot.lane.b32.xlu0 %v27, 16
    %v77 = vpop.permute.xlu0 %76
    %vm78 = vcmp.lt.s32.totalorder %v37, 16
    %v79 = vsel %vm78, %v75, %v77
    %v80 = vsel %vm78, %v73, %v75
    %v81 = vsel %vm78, %v71, %v73
    %v82 = vsel %vm78, %v77, %v71
    %s83 = scalar_lea.vmem %s5, 4
    %v84 = vld [vmem:[%s83] sm:$0xf]
    %v86 = vlaneseq
    %v87 = vshrl.u32 %v86, 7
    %v88 = vsub.s32 0, %v87
    %v89 = vrot.slane %v84, %v88
    %v90 = vlaneseq
    %v91 = vshrl.u32 %v90, 7
    %v92 = vsub.s32 1, %v91
    %v93 = vrot.slane %v84, %v92
    %v94 = vlaneseq
    %v95 = vshrl.u32 %v94, 7
    %v96 = vsub.s32 2, %v95
    %v97 = vrot.slane %v84, %v96
    %v98 = vlaneseq
    %v99 = vshrl.u32 %v98, 7
    %v100 = vsub.s32 3, %v99
    %v101 = vrot.slane %v84, %v100
    %v106 = vmul.f32 %v82, %v89
    %v107 = vmul.f32 %v81, %v93
    %v108 = vmul.f32 %v80, %v97
    %v109 = vmul.f32 %v79, %v101
    %s110 = scalar_lea.vmem %s1, 8
    %v111 = vld [vmem:[%s110] sm:$0xff]
    %vm112 = vcmask 64512
    %v114 = vsel %vm112, %v111, 0
    %116 = vmatprep.subr.mxu0 %v107
    %117 = vmatpush1.msra.mxu0 %v106
    %118 = vmatprep.subr.mxu0 0.0
    %119 = vmatpush1.msra.mxu0 0.0
    %120 = vmatprep.subr.mxu0 0.0
    %121 = vmatpush1.msra.mxu0 0.0
    %122 = vmatprep.subr.mxu0 0.0
    %123 = vmatpush1.msra.mxu0 0.0
    %124 = vmatprep.subr.mxu0 0.0
    %125 = vmatpush1.msra.mxu0 0.0
    %126 = vmatprep.subr.mxu0 0.0
    %127 = vmatpush1.msra.mxu0 0.0
    %128 = vmatprep.subr.mxu0 0.0
    %129 = vmatpush1.msra.mxu0 0.0
    %130 = vmatprep.subr.mxu0 0.0
    %131 = vmatpush1.msra.mxu0 0.0
    %132 = vmatprep.subr.mxu0 0.0
    %133 = vmatpush1.msra.mxu0 0.0
    %134 = vmatprep.subr.mxu0 0.0
    %135 = vmatpush1.msra.mxu0 0.0
    %136 = vmatprep.subr.mxu0 0.0
    %137 = vmatpush1.msra.mxu0 0.0
    %138 = vmatprep.subr.mxu0 0.0
    %139 = vmatpush1.msra.mxu0 0.0
    %140 = vmatprep.subr.mxu0 0.0
    %141 = vmatpush1.msra.mxu0 0.0
    %142 = vmatprep.subr.mxu0 0.0
    %143 = vmatpush1.msra.mxu0 0.0
    %144 = vmatprep.subr.mxu0 0.0
    %145 = vmatpush1.msra.mxu0 0.0
    %146 = vmatprep.subr.mxu0 0.0
    %147 = vmatpush1.msra.mxu0 0.0
    %148 = vmatprep.subr.mxu0 0.0
    %149 = vmatpush1.msra.mxu0 0.0
    %150 = vmatprep.subr.mxu0 0.0
    %151 = vmatpush1.msra.mxu0 0.0
    %152 = vmatprep.subr.mxu0 0.0
    %153 = vmatpush1.msra.mxu0 0.0
    %154 = vmatprep.subr.mxu0 0.0
    %155 = vmatpush1.msra.mxu0 0.0
    %156 = vmatprep.subr.mxu0 0.0
    %157 = vmatpush1.msra.mxu0 0.0
    %158 = vmatprep.subr.mxu0 0.0
    %159 = vmatpush1.msra.mxu0 0.0
    %160 = vmatprep.subr.mxu0 0.0
    %161 = vmatpush1.msra.mxu0 0.0
    %162 = vmatprep.subr.mxu0 0.0
    %163 = vmatpush1.msra.mxu0 0.0
    %164 = vmatprep.subr.mxu0 0.0
    %165 = vmatpush1.msra.mxu0 0.0
    %166 = vmatprep.subr.mxu0 0.0
    %167 = vmatpush1.msra.mxu0 0.0
    %168 = vmatprep.subr.mxu0 0.0
    %169 = vmatpush1.msra.mxu0 0.0
    %170 = vmatprep.subr.mxu0 0.0
    %171 = vmatpush1.msra.mxu0 0.0
    %172 = vmatprep.subr.mxu0 0.0
    %173 = vmatpush1.msra.mxu0 0.0
    %174 = vmatprep.subr.mxu0 0.0
    %175 = vmatpush1.msra.mxu0 0.0
    %176 = vmatprep.subr.mxu0 0.0
    %177 = vmatpush1.msra.mxu0 0.0
    %178 = vmatprep.subr.mxu0 0.0
    %179 = vmatpush1.msra.mxu0 0.0
    %180 = vmatprep.mubr.f32.mxu0 0.0
    %181 = vmatmul.mubr.f32.gmra.mrb[0].mxu0 %v114
    %v182 = vpop.f32.mrb[0].mxu0
    %v183 = vadd.f32 0.0, %v182
    %v184 = vpop.f32.mrb[0].mxu0
    %v185 = vadd.f32 0.0, %v184
    %186 = vdwg.mxu0
    %187 = vmatprep.subr.mxu0 %v109
    %188 = vmatpush1.msra.mxu0 %v108
    %189 = vmatprep.subr.mxu0 0.0
    %190 = vmatpush1.msra.mxu0 0.0
    %191 = vmatprep.subr.mxu0 0.0
    %192 = vmatpush1.msra.mxu0 0.0
    %193 = vmatprep.subr.mxu0 0.0
    %194 = vmatpush1.msra.mxu0 0.0
    %195 = vmatprep.subr.mxu0 0.0
    %196 = vmatpush1.msra.mxu0 0.0
    %197 = vmatprep.subr.mxu0 0.0
    %198 = vmatpush1.msra.mxu0 0.0
    %199 = vmatprep.subr.mxu0 0.0
    %200 = vmatpush1.msra.mxu0 0.0
    %201 = vmatprep.subr.mxu0 0.0
    %202 = vmatpush1.msra.mxu0 0.0
    %203 = vmatprep.subr.mxu0 0.0
    %204 = vmatpush1.msra.mxu0 0.0
    %205 = vmatprep.subr.mxu0 0.0
    %206 = vmatpush1.msra.mxu0 0.0
    %207 = vmatprep.subr.mxu0 0.0
    %208 = vmatpush1.msra.mxu0 0.0
    %209 = vmatprep.subr.mxu0 0.0
    %210 = vmatpush1.msra.mxu0 0.0
    %211 = vmatprep.subr.mxu0 0.0
    %212 = vmatpush1.msra.mxu0 0.0
    %213 = vmatprep.subr.mxu0 0.0
    %214 = vmatpush1.msra.mxu0 0.0
    %215 = vmatprep.subr.mxu0 0.0
    %216 = vmatpush1.msra.mxu0 0.0
    %217 = vmatprep.subr.mxu0 0.0
    %218 = vmatpush1.msra.mxu0 0.0
    %219 = vmatprep.subr.mxu0 0.0
    %220 = vmatpush1.msra.mxu0 0.0
    %221 = vmatprep.subr.mxu0 0.0
    %222 = vmatpush1.msra.mxu0 0.0
    %223 = vmatprep.subr.mxu0 0.0
    %224 = vmatpush1.msra.mxu0 0.0
    %225 = vmatprep.subr.mxu0 0.0
    %226 = vmatpush1.msra.mxu0 0.0
    %227 = vmatprep.subr.mxu0 0.0
    %228 = vmatpush1.msra.mxu0 0.0
    %229 = vmatprep.subr.mxu0 0.0
    %230 = vmatpush1.msra.mxu0 0.0
    %231 = vmatprep.subr.mxu0 0.0
    %232 = vmatpush1.msra.mxu0 0.0
    %233 = vmatprep.subr.mxu0 0.0
    %234 = vmatpush1.msra.mxu0 0.0
    %235 = vmatprep.subr.mxu0 0.0
    %236 = vmatpush1.msra.mxu0 0.0
    %237 = vmatprep.subr.mxu0 0.0
    %238 = vmatpush1.msra.mxu0 0.0
    %239 = vmatprep.subr.mxu0 0.0
    %240 = vmatpush1.msra.mxu0 0.0
    %241 = vmatprep.subr.mxu0 0.0
    %242 = vmatpush1.msra.mxu0 0.0
    %243 = vmatprep.subr.mxu0 0.0
    %244 = vmatpush1.msra.mxu0 0.0
    %245 = vmatprep.subr.mxu0 0.0
    %246 = vmatpush1.msra.mxu0 0.0
    %247 = vmatprep.subr.mxu0 0.0
    %248 = vmatpush1.msra.mxu0 0.0
    %249 = vmatprep.subr.mxu0 0.0
    %250 = vmatpush1.msra.mxu0 0.0
    %251 = vmatprep.mubr.f32.mxu0 0.0
    %252 = vmatmul.mubr.f32.gmra.mrb[0].mxu0 %v114
    %v253 = vpop.f32.mrb[0].mxu0
    %v254 = vadd.f32 0.0, %v253
    %v255 = vpop.f32.mrb[0].mxu0
    %v256 = vadd.f32 0.0, %v255
    %257 = vdwg.mxu0
    %v259 = vsel %vm112, %v69, 0
    %261 = vmatprep.subr.mxu0 %v66
    %262 = vmatpush1.msra.mxu0 %v65
    %263 = vmatprep.subr.mxu0 0.0
    %264 = vmatpush1.msra.mxu0 0.0
    %265 = vmatprep.subr.mxu0 0.0
    %266 = vmatpush1.msra.mxu0 0.0
    %267 = vmatprep.subr.mxu0 0.0
    %268 = vmatpush1.msra.mxu0 0.0
    %269 = vmatprep.subr.mxu0 0.0
    %270 = vmatpush1.msra.mxu0 0.0
    %271 = vmatprep.subr.mxu0 0.0
    %272 = vmatpush1.msra.mxu0 0.0
    %273 = vmatprep.subr.mxu0 0.0
    %274 = vmatpush1.msra.mxu0 0.0
    %275 = vmatprep.subr.mxu0 0.0
    %276 = vmatpush1.msra.mxu0 0.0
    %277 = vmatprep.subr.mxu0 0.0
    %278 = vmatpush1.msra.mxu0 0.0
    %279 = vmatprep.subr.mxu0 0.0
    %280 = vmatpush1.msra.mxu0 0.0
    %281 = vmatprep.subr.mxu0 0.0
    %282 = vmatpush1.msra.mxu0 0.0
    %283 = vmatprep.subr.mxu0 0.0
    %284 = vmatpush1.msra.mxu0 0.0
    %285 = vmatprep.subr.mxu0 0.0
    %286 = vmatpush1.msra.mxu0 0.0
    %287 = vmatprep.subr.mxu0 0.0
    %288 = vmatpush1.msra.mxu0 0.0
    %289 = vmatprep.subr.mxu0 0.0
    %290 = vmatpush1.msra.mxu0 0.0
    %291 = vmatprep.subr.mxu0 0.0
    %292 = vmatpush1.msra.mxu0 0.0
    %293 = vmatprep.subr.mxu0 0.0
    %294 = vmatpush1.msra.mxu0 0.0
    %295 = vmatprep.subr.mxu0 0.0
    %296 = vmatpush1.msra.mxu0 0.0
    %297 = vmatprep.subr.mxu0 0.0
    %298 = vmatpush1.msra.mxu0 0.0
    %299 = vmatprep.subr.mxu0 0.0
    %300 = vmatpush1.msra.mxu0 0.0
    %301 = vmatprep.subr.mxu0 0.0
    %302 = vmatpush1.msra.mxu0 0.0
    %303 = vmatprep.subr.mxu0 0.0
    %304 = vmatpush1.msra.mxu0 0.0
    %305 = vmatprep.subr.mxu0 0.0
    %306 = vmatpush1.msra.mxu0 0.0
    %307 = vmatprep.subr.mxu0 0.0
    %308 = vmatpush1.msra.mxu0 0.0
    %309 = vmatprep.subr.mxu0 0.0
    %310 = vmatpush1.msra.mxu0 0.0
    %311 = vmatprep.subr.mxu0 0.0
    %312 = vmatpush1.msra.mxu0 0.0
    %313 = vmatprep.subr.mxu0 0.0
    %314 = vmatpush1.msra.mxu0 0.0
    %315 = vmatprep.subr.mxu0 0.0
    %316 = vmatpush1.msra.mxu0 0.0
    %317 = vmatprep.subr.mxu0 0.0
    %318 = vmatpush1.msra.mxu0 0.0
    %319 = vmatprep.subr.mxu0 0.0
    %320 = vmatpush1.msra.mxu0 0.0
    %321 = vmatprep.subr.mxu0 0.0
    %322 = vmatpush1.msra.mxu0 0.0
    %323 = vmatprep.subr.mxu0 0.0
    %324 = vmatpush1.msra.mxu0 0.0
    %325 = vmatprep.mubr.f32.mxu0 0.0
    %326 = vmatmul.mubr.f32.gmra.mrb[0].mxu0 %v259
    %v327 = vpop.f32.mrb[0].mxu0
    %v328 = vadd.f32 %v183, %v327
    %v329 = vpop.f32.mrb[0].mxu0
    %v330 = vadd.f32 %v185, %v329
    %331 = vdwg.mxu0
    %332 = vmatprep.subr.mxu0 %v68
    %333 = vmatpush1.msra.mxu0 %v67
    %334 = vmatprep.subr.mxu0 0.0
    %335 = vmatpush1.msra.mxu0 0.0
    %336 = vmatprep.subr.mxu0 0.0
    %337 = vmatpush1.msra.mxu0 0.0
    %338 = vmatprep.subr.mxu0 0.0
    %339 = vmatpush1.msra.mxu0 0.0
    %340 = vmatprep.subr.mxu0 0.0
    %341 = vmatpush1.msra.mxu0 0.0
    %342 = vmatprep.subr.mxu0 0.0
    %343 = vmatpush1.msra.mxu0 0.0
    %344 = vmatprep.subr.mxu0 0.0
    %345 = vmatpush1.msra.mxu0 0.0
    %346 = vmatprep.subr.mxu0 0.0
    %347 = vmatpush1.msra.mxu0 0.0
    %348 = vmatprep.subr.mxu0 0.0
    %349 = vmatpush1.msra.mxu0 0.0
    %350 = vmatprep.subr.mxu0 0.0
    %351 = vmatpush1.msra.mxu0 0.0
    %352 = vmatprep.subr.mxu0 0.0
    %353 = vmatpush1.msra.mxu0 0.0
    %354 = vmatprep.subr.mxu0 0.0
    %355 = vmatpush1.msra.mxu0 0.0
    %356 = vmatprep.subr.mxu0 0.0
    %357 = vmatpush1.msra.mxu0 0.0
    %358 = vmatprep.subr.mxu0 0.0
    %359 = vmatpush1.msra.mxu0 0.0
    %360 = vmatprep.subr.mxu0 0.0
    %361 = vmatpush1.msra.mxu0 0.0
    %362 = vmatprep.subr.mxu0 0.0
    %363 = vmatpush1.msra.mxu0 0.0
    %364 = vmatprep.subr.mxu0 0.0
    %365 = vmatpush1.msra.mxu0 0.0
    %366 = vmatprep.subr.mxu0 0.0
    %367 = vmatpush1.msra.mxu0 0.0
    %368 = vmatprep.subr.mxu0 0.0
    %369 = vmatpush1.msra.mxu0 0.0
    %370 = vmatprep.subr.mxu0 0.0
    %371 = vmatpush1.msra.mxu0 0.0
    %372 = vmatprep.subr.mxu0 0.0
    %373 = vmatpush1.msra.mxu0 0.0
    %374 = vmatprep.subr.mxu0 0.0
    %375 = vmatpush1.msra.mxu0 0.0
    %376 = vmatprep.subr.mxu0 0.0
    %377 = vmatpush1.msra.mxu0 0.0
    %378 = vmatprep.subr.mxu0 0.0
    %379 = vmatpush1.msra.mxu0 0.0
    %380 = vmatprep.subr.mxu0 0.0
    %381 = vmatpush1.msra.mxu0 0.0
    %382 = vmatprep.subr.mxu0 0.0
    %383 = vmatpush1.msra.mxu0 0.0
    %384 = vmatprep.subr.mxu0 0.0
    %385 = vmatpush1.msra.mxu0 0.0
    %386 = vmatprep.subr.mxu0 0.0
    %387 = vmatpush1.msra.mxu0 0.0
    %388 = vmatprep.subr.mxu0 0.0
    %389 = vmatpush1.msra.mxu0 0.0
    %390 = vmatprep.subr.mxu0 0.0
    %391 = vmatpush1.msra.mxu0 0.0
    %392 = vmatprep.subr.mxu0 0.0
    %393 = vmatpush1.msra.mxu0 0.0
    %394 = vmatprep.subr.mxu0 0.0
    %395 = vmatpush1.msra.mxu0 0.0
    %396 = vmatprep.mubr.f32.mxu0 0.0
    %397 = vmatmul.mubr.f32.gmra.mrb[0].mxu0 %v259
    %v398 = vpop.f32.mrb[0].mxu0
    %v399 = vadd.f32 %v254, %v398
    %v400 = vpop.f32.mrb[0].mxu0
    %v401 = vadd.f32 %v256, %v400
    %402 = vdwg.mxu0
    %403 = vrot.lane.b32.xlu0 %v24, 15
    %v404 = vpop.permute.xlu0 %403
    %405 = vrot.lane.b32.xlu0 %v25, 15
    %v406 = vpop.permute.xlu0 %405
    %407 = vrot.lane.b32.xlu0 %v26, 15
    %v408 = vpop.permute.xlu0 %407
    %409 = vrot.lane.b32.xlu0 %v27, 15
    %v410 = vpop.permute.xlu0 %409
    %vm411 = vcmp.lt.s32.totalorder %v37, 15
    %v412 = vsel %vm411, %v408, %v410
    %v413 = vsel %vm411, %v406, %v408
    %v414 = vsel %vm411, %v404, %v406
    %v415 = vsel %vm411, %v410, %v404
    %s416 = scalar_lea.vmem %s5, 8
    %v417 = vld [vmem:[%s416] sm:$0xf]
    %v419 = vlaneseq
    %v420 = vshrl.u32 %v419, 7
    %v421 = vsub.s32 0, %v420
    %v422 = vrot.slane %v417, %v421
    %v423 = vlaneseq
    %v424 = vshrl.u32 %v423, 7
    %v425 = vsub.s32 1, %v424
    %v426 = vrot.slane %v417, %v425
    %v427 = vlaneseq
    %v428 = vshrl.u32 %v427, 7
    %v429 = vsub.s32 2, %v428
    %v430 = vrot.slane %v417, %v429
    %v431 = vlaneseq
    %v432 = vshrl.u32 %v431, 7
    %v433 = vsub.s32 3, %v432
    %v434 = vrot.slane %v417, %v433
    %v439 = vmul.f32 %v415, %v422
    %v440 = vmul.f32 %v414, %v426
    %v441 = vmul.f32 %v413, %v430
    %v442 = vmul.f32 %v412, %v434
    %s443 = scalar_lea.vmem %s1, 16
    %v444 = vld [vmem:[%s443] sm:$0xff]
    %v446 = vsel %vm112, %v444, 0
    %448 = vmatprep.subr.mxu0 %v440
    %449 = vmatpush1.msra.mxu0 %v439
    %450 = vmatprep.subr.mxu0 0.0
    %451 = vmatpush1.msra.mxu0 0.0
    %452 = vmatprep.subr.mxu0 0.0
    %453 = vmatpush1.msra.mxu0 0.0
    %454 = vmatprep.subr.mxu0 0.0
    %455 = vmatpush1.msra.mxu0 0.0
    %456 = vmatprep.subr.mxu0 0.0
    %457 = vmatpush1.msra.mxu0 0.0
    %458 = vmatprep.subr.mxu0 0.0
    %459 = vmatpush1.msra.mxu0 0.0
    %460 = vmatprep.subr.mxu0 0.0
    %461 = vmatpush1.msra.mxu0 0.0
    %462 = vmatprep.subr.mxu0 0.0
    %463 = vmatpush1.msra.mxu0 0.0
    %464 = vmatprep.subr.mxu0 0.0
    %465 = vmatpush1.msra.mxu0 0.0
    %466 = vmatprep.subr.mxu0 0.0
    %467 = vmatpush1.msra.mxu0 0.0
    %468 = vmatprep.subr.mxu0 0.0
    %469 = vmatpush1.msra.mxu0 0.0
    %470 = vmatprep.subr.mxu0 0.0
    %471 = vmatpush1.msra.mxu0 0.0
    %472 = vmatprep.subr.mxu0 0.0
    %473 = vmatpush1.msra.mxu0 0.0
    %474 = vmatprep.subr.mxu0 0.0
    %475 = vmatpush1.msra.mxu0 0.0
    %476 = vmatprep.subr.mxu0 0.0
    %477 = vmatpush1.msra.mxu0 0.0
    %478 = vmatprep.subr.mxu0 0.0
    %479 = vmatpush1.msra.mxu0 0.0
    %480 = vmatprep.subr.mxu0 0.0
    %481 = vmatpush1.msra.mxu0 0.0
    %482 = vmatprep.subr.mxu0 0.0
    %483 = vmatpush1.msra.mxu0 0.0
    %484 = vmatprep.subr.mxu0 0.0
    %485 = vmatpush1.msra.mxu0 0.0
    %486 = vmatprep.subr.mxu0 0.0
    %487 = vmatpush1.msra.mxu0 0.0
    %488 = vmatprep.subr.mxu0 0.0
    %489 = vmatpush1.msra.mxu0 0.0
    %490 = vmatprep.subr.mxu0 0.0
    %491 = vmatpush1.msra.mxu0 0.0
    %492 = vmatprep.subr.mxu0 0.0
    %493 = vmatpush1.msra.mxu0 0.0
    %494 = vmatprep.subr.mxu0 0.0
    %495 = vmatpush1.msra.mxu0 0.0
    %496 = vmatprep.subr.mxu0 0.0
    %497 = vmatpush1.msra.mxu0 0.0
    %498 = vmatprep.subr.mxu0 0.0
    %499 = vmatpush1.msra.mxu0 0.0
    %500 = vmatprep.subr.mxu0 0.0
    %501 = vmatpush1.msra.mxu0 0.0
    %502 = vmatprep.subr.mxu0 0.0
    %503 = vmatpush1.msra.mxu0 0.0
    %504 = vmatprep.subr.mxu0 0.0
    %505 = vmatpush1.msra.mxu0 0.0
    %506 = vmatprep.subr.mxu0 0.0
    %507 = vmatpush1.msra.mxu0 0.0
    %508 = vmatprep.subr.mxu0 0.0
    %509 = vmatpush1.msra.mxu0 0.0
    %510 = vmatprep.subr.mxu0 0.0
    %511 = vmatpush1.msra.mxu0 0.0
    %512 = vmatprep.mubr.f32.mxu0 0.0
    %513 = vmatmul.mubr.f32.gmra.mrb[0].mxu0 %v446
    %v514 = vpop.f32.mrb[0].mxu0
    %v515 = vadd.f32 0.0, %v514
    %v516 = vpop.f32.mrb[0].mxu0
    %v517 = vadd.f32 0.0, %v516
    %518 = vdwg.mxu0
    %519 = vmatprep.subr.mxu0 %v442
    %520 = vmatpush1.msra.mxu0 %v441
    %521 = vmatprep.subr.mxu0 0.0
    %522 = vmatpush1.msra.mxu0 0.0
    %523 = vmatprep.subr.mxu0 0.0
    %524 = vmatpush1.msra.mxu0 0.0
    %525 = vmatprep.subr.mxu0 0.0
    %526 = vmatpush1.msra.mxu0 0.0
    %527 = vmatprep.subr.mxu0 0.0
    %528 = vmatpush1.msra.mxu0 0.0
    %529 = vmatprep.subr.mxu0 0.0
    %530 = vmatpush1.msra.mxu0 0.0
    %531 = vmatprep.subr.mxu0 0.0
    %532 = vmatpush1.msra.mxu0 0.0
    %533 = vmatprep.subr.mxu0 0.0
    %534 = vmatpush1.msra.mxu0 0.0
    %535 = vmatprep.subr.mxu0 0.0
    %536 = vmatpush1.msra.mxu0 0.0
    %537 = vmatprep.subr.mxu0 0.0
    %538 = vmatpush1.msra.mxu0 0.0
    %539 = vmatprep.subr.mxu0 0.0
    %540 = vmatpush1.msra.mxu0 0.0
    %541 = vmatprep.subr.mxu0 0.0
    %542 = vmatpush1.msra.mxu0 0.0
    %543 = vmatprep.subr.mxu0 0.0
    %544 = vmatpush1.msra.mxu0 0.0
    %545 = vmatprep.subr.mxu0 0.0
    %546 = vmatpush1.msra.mxu0 0.0
    %547 = vmatprep.subr.mxu0 0.0
    %548 = vmatpush1.msra.mxu0 0.0
    %549 = vmatprep.subr.mxu0 0.0
    %550 = vmatpush1.msra.mxu0 0.0
    %551 = vmatprep.subr.mxu0 0.0
    %552 = vmatpush1.msra.mxu0 0.0
    %553 = vmatprep.subr.mxu0 0.0
    %554 = vmatpush1.msra.mxu0 0.0
    %555 = vmatprep.subr.mxu0 0.0
    %556 = vmatpush1.msra.mxu0 0.0
    %557 = vmatprep.subr.mxu0 0.0
    %558 = vmatpush1.msra.mxu0 0.0
    %559 = vmatprep.subr.mxu0 0.0
    %560 = vmatpush1.msra.mxu0 0.0
    %561 = vmatprep.subr.mxu0 0.0
    %562 = vmatpush1.msra.mxu0 0.0
    %563 = vmatprep.subr.mxu0 0.0
    %564 = vmatpush1.msra.mxu0 0.0
    %565 = vmatprep.subr.mxu0 0.0
    %566 = vmatpush1.msra.mxu0 0.0
    %567 = vmatprep.subr.mxu0 0.0
    %568 = vmatpush1.msra.mxu0 0.0
    %569 = vmatprep.subr.mxu0 0.0
    %570 = vmatpush1.msra.mxu0 0.0
    %571 = vmatprep.subr.mxu0 0.0
    %572 = vmatpush1.msra.mxu0 0.0
    %573 = vmatprep.subr.mxu0 0.0
    %574 = vmatpush1.msra.mxu0 0.0
    %575 = vmatprep.subr.mxu0 0.0
    %576 = vmatpush1.msra.mxu0 0.0
    %577 = vmatprep.subr.mxu0 0.0
    %578 = vmatpush1.msra.mxu0 0.0
    %579 = vmatprep.subr.mxu0 0.0
    %580 = vmatpush1.msra.mxu0 0.0
    %581 = vmatprep.subr.mxu0 0.0
    %582 = vmatpush1.msra.mxu0 0.0
    %583 = vmatprep.mubr.f32.mxu0 0.0
    %584 = vmatmul.mubr.f32.gmra.mrb[0].mxu0 %v446
    %v585 = vpop.f32.mrb[0].mxu0
    %v586 = vadd.f32 0.0, %v585
    %v587 = vpop.f32.mrb[0].mxu0
    %v588 = vadd.f32 0.0, %v587
    %589 = vdwg.mxu0
    %v590 = vadd.f32 %v328, %v515
    %v591 = vadd.f32 %v330, %v517
    %v592 = vadd.f32 %v399, %v586
    %v593 = vadd.f32 %v401, %v588
    %594 = vrot.lane.b32.xlu0 %v24, 1
    %v595 = vpop.permute.xlu0 %594
    %596 = vrot.lane.b32.xlu0 %v25, 1
    %v597 = vpop.permute.xlu0 %596
    %598 = vrot.lane.b32.xlu0 %v26, 1
    %v599 = vpop.permute.xlu0 %598
    %600 = vrot.lane.b32.xlu0 %v27, 1
    %v601 = vpop.permute.xlu0 %600
    %vm602 = vcmp.lt.s32.totalorder %v37, 1
    %v603 = vsel %vm602, %v599, %v601
    %v604 = vsel %vm602, %v597, %v599
    %v605 = vsel %vm602, %v595, %v597
    %v606 = vsel %vm602, %v601, %v595
    %s607 = scalar_lea.vmem %s5, 12
    %v608 = vld [vmem:[%s607] sm:$0xf]
    %v610 = vlaneseq
    %v611 = vshrl.u32 %v610, 7
    %v612 = vsub.s32 0, %v611
    %v613 = vrot.slane %v608, %v612
    %v614 = vlaneseq
    %v615 = vshrl.u32 %v614, 7
    %v616 = vsub.s32 1, %v615
    %v617 = vrot.slane %v608, %v616
    %v618 = vlaneseq
    %v619 = vshrl.u32 %v618, 7
    %v620 = vsub.s32 2, %v619
    %v621 = vrot.slane %v608, %v620
    %v622 = vlaneseq
    %v623 = vshrl.u32 %v622, 7
    %v624 = vsub.s32 3, %v623
    %v625 = vrot.slane %v608, %v624
    %v630 = vmul.f32 %v606, %v613
    %v631 = vmul.f32 %v605, %v617
    %v632 = vmul.f32 %v604, %v621
    %v633 = vmul.f32 %v603, %v625
    %s634 = scalar_lea.vmem %s1, 24
    %v635 = vld [vmem:[%s634] sm:$0xff]
    %v637 = vsel %vm112, %v635, 0
    %639 = vmatprep.subr.mxu0 %v631
    %640 = vmatpush1.msra.mxu0 %v630
    %641 = vmatprep.subr.mxu0 0.0
    %642 = vmatpush1.msra.mxu0 0.0
    %643 = vmatprep.subr.mxu0 0.0
    %644 = vmatpush1.msra.mxu0 0.0
    %645 = vmatprep.subr.mxu0 0.0
    %646 = vmatpush1.msra.mxu0 0.0
    %647 = vmatprep.subr.mxu0 0.0
    %648 = vmatpush1.msra.mxu0 0.0
    %649 = vmatprep.subr.mxu0 0.0
    %650 = vmatpush1.msra.mxu0 0.0
    %651 = vmatprep.subr.mxu0 0.0
    %652 = vmatpush1.msra.mxu0 0.0
    %653 = vmatprep.subr.mxu0 0.0
    %654 = vmatpush1.msra.mxu0 0.0
    %655 = vmatprep.subr.mxu0 0.0
    %656 = vmatpush1.msra.mxu0 0.0
    %657 = vmatprep.subr.mxu0 0.0
    %658 = vmatpush1.msra.mxu0 0.0
    %659 = vmatprep.subr.mxu0 0.0
    %660 = vmatpush1.msra.mxu0 0.0
    %661 = vmatprep.subr.mxu0 0.0
    %662 = vmatpush1.msra.mxu0 0.0
    %663 = vmatprep.subr.mxu0 0.0
    %664 = vmatpush1.msra.mxu0 0.0
    %665 = vmatprep.subr.mxu0 0.0
    %666 = vmatpush1.msra.mxu0 0.0
    %667 = vmatprep.subr.mxu0 0.0
    %668 = vmatpush1.msra.mxu0 0.0
    %669 = vmatprep.subr.mxu0 0.0
    %670 = vmatpush1.msra.mxu0 0.0
    %671 = vmatprep.subr.mxu0 0.0
    %672 = vmatpush1.msra.mxu0 0.0
    %673 = vmatprep.subr.mxu0 0.0
    %674 = vmatpush1.msra.mxu0 0.0
    %675 = vmatprep.subr.mxu0 0.0
    %676 = vmatpush1.msra.mxu0 0.0
    %677 = vmatprep.subr.mxu0 0.0
    %678 = vmatpush1.msra.mxu0 0.0
    %679 = vmatprep.subr.mxu0 0.0
    %680 = vmatpush1.msra.mxu0 0.0
    %681 = vmatprep.subr.mxu0 0.0
    %682 = vmatpush1.msra.mxu0 0.0
    %683 = vmatprep.subr.mxu0 0.0
    %684 = vmatpush1.msra.mxu0 0.0
    %685 = vmatprep.subr.mxu0 0.0
    %686 = vmatpush1.msra.mxu0 0.0
    %687 = vmatprep.subr.mxu0 0.0
    %688 = vmatpush1.msra.mxu0 0.0
    %689 = vmatprep.subr.mxu0 0.0
    %690 = vmatpush1.msra.mxu0 0.0
    %691 = vmatprep.subr.mxu0 0.0
    %692 = vmatpush1.msra.mxu0 0.0
    %693 = vmatprep.subr.mxu0 0.0
    %694 = vmatpush1.msra.mxu0 0.0
    %695 = vmatprep.subr.mxu0 0.0
    %696 = vmatpush1.msra.mxu0 0.0
    %697 = vmatprep.subr.mxu0 0.0
    %698 = vmatpush1.msra.mxu0 0.0
    %699 = vmatprep.subr.mxu0 0.0
    %700 = vmatpush1.msra.mxu0 0.0
    %701 = vmatprep.subr.mxu0 0.0
    %702 = vmatpush1.msra.mxu0 0.0
    %703 = vmatprep.mubr.f32.mxu0 0.0
    %704 = vmatmul.mubr.f32.gmra.mrb[0].mxu0 %v637
    %v705 = vpop.f32.mrb[0].mxu0
    %v706 = vadd.f32 0.0, %v705
    %v707 = vpop.f32.mrb[0].mxu0
    %v708 = vadd.f32 0.0, %v707
    %709 = vdwg.mxu0
    %710 = vmatprep.subr.mxu0 %v633
    %711 = vmatpush1.msra.mxu0 %v632
    %712 = vmatprep.subr.mxu0 0.0
    %713 = vmatpush1.msra.mxu0 0.0
    %714 = vmatprep.subr.mxu0 0.0
    %715 = vmatpush1.msra.mxu0 0.0
    %716 = vmatprep.subr.mxu0 0.0
    %717 = vmatpush1.msra.mxu0 0.0
    %718 = vmatprep.subr.mxu0 0.0
    %719 = vmatpush1.msra.mxu0 0.0
    %720 = vmatprep.subr.mxu0 0.0
    %721 = vmatpush1.msra.mxu0 0.0
    %722 = vmatprep.subr.mxu0 0.0
    %723 = vmatpush1.msra.mxu0 0.0
    %724 = vmatprep.subr.mxu0 0.0
    %725 = vmatpush1.msra.mxu0 0.0
    %726 = vmatprep.subr.mxu0 0.0
    %727 = vmatpush1.msra.mxu0 0.0
    %728 = vmatprep.subr.mxu0 0.0
    %729 = vmatpush1.msra.mxu0 0.0
    %730 = vmatprep.subr.mxu0 0.0
    %731 = vmatpush1.msra.mxu0 0.0
    %732 = vmatprep.subr.mxu0 0.0
    %733 = vmatpush1.msra.mxu0 0.0
    %734 = vmatprep.subr.mxu0 0.0
    %735 = vmatpush1.msra.mxu0 0.0
    %736 = vmatprep.subr.mxu0 0.0
    %737 = vmatpush1.msra.mxu0 0.0
    %738 = vmatprep.subr.mxu0 0.0
    %739 = vmatpush1.msra.mxu0 0.0
    %740 = vmatprep.subr.mxu0 0.0
    %741 = vmatpush1.msra.mxu0 0.0
    %742 = vmatprep.subr.mxu0 0.0
    %743 = vmatpush1.msra.mxu0 0.0
    %744 = vmatprep.subr.mxu0 0.0
    %745 = vmatpush1.msra.mxu0 0.0
    %746 = vmatprep.subr.mxu0 0.0
    %747 = vmatpush1.msra.mxu0 0.0
    %748 = vmatprep.subr.mxu0 0.0
    %749 = vmatpush1.msra.mxu0 0.0
    %750 = vmatprep.subr.mxu0 0.0
    %751 = vmatpush1.msra.mxu0 0.0
    %752 = vmatprep.subr.mxu0 0.0
    %753 = vmatpush1.msra.mxu0 0.0
    %754 = vmatprep.subr.mxu0 0.0
    %755 = vmatpush1.msra.mxu0 0.0
    %756 = vmatprep.subr.mxu0 0.0
    %757 = vmatpush1.msra.mxu0 0.0
    %758 = vmatprep.subr.mxu0 0.0
    %759 = vmatpush1.msra.mxu0 0.0
    %760 = vmatprep.subr.mxu0 0.0
    %761 = vmatpush1.msra.mxu0 0.0
    %762 = vmatprep.subr.mxu0 0.0
    %763 = vmatpush1.msra.mxu0 0.0
    %764 = vmatprep.subr.mxu0 0.0
    %765 = vmatpush1.msra.mxu0 0.0
    %766 = vmatprep.subr.mxu0 0.0
    %767 = vmatpush1.msra.mxu0 0.0
    %768 = vmatprep.subr.mxu0 0.0
    %769 = vmatpush1.msra.mxu0 0.0
    %770 = vmatprep.subr.mxu0 0.0
    %771 = vmatpush1.msra.mxu0 0.0
    %772 = vmatprep.subr.mxu0 0.0
    %773 = vmatpush1.msra.mxu0 0.0
    %774 = vmatprep.mubr.f32.mxu0 0.0
    %775 = vmatmul.mubr.f32.gmra.mrb[0].mxu0 %v637
    %v776 = vpop.f32.mrb[0].mxu0
    %v777 = vadd.f32 0.0, %v776
    %v778 = vpop.f32.mrb[0].mxu0
    %v779 = vadd.f32 0.0, %v778
    %780 = vdwg.mxu0
    %v781 = vadd.f32 %v590, %v706
    %v782 = vadd.f32 %v591, %v708
    %v783 = vadd.f32 %v592, %v777
    %v784 = vadd.f32 %v593, %v779
    %s785 = scalar_lea.vmem %s1, 32
    %v786 = vld [vmem:[%s785] sm:$0xff]
    %v788 = vsel %vm112, %v786, 0
    %790 = vmatprep.subr.mxu0 %v25
    %791 = vmatpush1.msra.mxu0 %v24
    %792 = vmatprep.subr.mxu0 0.0
    %793 = vmatpush1.msra.mxu0 0.0
    %794 = vmatprep.subr.mxu0 0.0
    %795 = vmatpush1.msra.mxu0 0.0
    %796 = vmatprep.subr.mxu0 0.0
    %797 = vmatpush1.msra.mxu0 0.0
    %798 = vmatprep.subr.mxu0 0.0
    %799 = vmatpush1.msra.mxu0 0.0
    %800 = vmatprep.subr.mxu0 0.0
    %801 = vmatpush1.msra.mxu0 0.0
    %802 = vmatprep.subr.mxu0 0.0
    %803 = vmatpush1.msra.mxu0 0.0
    %804 = vmatprep.subr.mxu0 0.0
    %805 = vmatpush1.msra.mxu0 0.0
    %806 = vmatprep.subr.mxu0 0.0
    %807 = vmatpush1.msra.mxu0 0.0
    %808 = vmatprep.subr.mxu0 0.0
    %809 = vmatpush1.msra.mxu0 0.0
    %810 = vmatprep.subr.mxu0 0.0
    %811 = vmatpush1.msra.mxu0 0.0
    %812 = vmatprep.subr.mxu0 0.0
    %813 = vmatpush1.msra.mxu0 0.0
    %814 = vmatprep.subr.mxu0 0.0
    %815 = vmatpush1.msra.mxu0 0.0
    %816 = vmatprep.subr.mxu0 0.0
    %817 = vmatpush1.msra.mxu0 0.0
    %818 = vmatprep.subr.mxu0 0.0
    %819 = vmatpush1.msra.mxu0 0.0
    %820 = vmatprep.subr.mxu0 0.0
    %821 = vmatpush1.msra.mxu0 0.0
    %822 = vmatprep.subr.mxu0 0.0
    %823 = vmatpush1.msra.mxu0 0.0
    %824 = vmatprep.subr.mxu0 0.0
    %825 = vmatpush1.msra.mxu0 0.0
    %826 = vmatprep.subr.mxu0 0.0
    %827 = vmatpush1.msra.mxu0 0.0
    %828 = vmatprep.subr.mxu0 0.0
    %829 = vmatpush1.msra.mxu0 0.0
    %830 = vmatprep.subr.mxu0 0.0
    %831 = vmatpush1.msra.mxu0 0.0
    %832 = vmatprep.subr.mxu0 0.0
    %833 = vmatpush1.msra.mxu0 0.0
    %834 = vmatprep.subr.mxu0 0.0
    %835 = vmatpush1.msra.mxu0 0.0
    %836 = vmatprep.subr.mxu0 0.0
    %837 = vmatpush1.msra.mxu0 0.0
    %838 = vmatprep.subr.mxu0 0.0
    %839 = vmatpush1.msra.mxu0 0.0
    %840 = vmatprep.subr.mxu0 0.0
    %841 = vmatpush1.msra.mxu0 0.0
    %842 = vmatprep.subr.mxu0 0.0
    %843 = vmatpush1.msra.mxu0 0.0
    %844 = vmatprep.subr.mxu0 0.0
    %845 = vmatpush1.msra.mxu0 0.0
    %846 = vmatprep.subr.mxu0 0.0
    %847 = vmatpush1.msra.mxu0 0.0
    %848 = vmatprep.subr.mxu0 0.0
    %849 = vmatpush1.msra.mxu0 0.0
    %850 = vmatprep.subr.mxu0 0.0
    %851 = vmatpush1.msra.mxu0 0.0
    %852 = vmatprep.subr.mxu0 0.0
    %853 = vmatpush1.msra.mxu0 0.0
    %854 = vmatprep.mubr.f32.mxu0 0.0
    %855 = vmatmul.mubr.f32.gmra.mrb[0].mxu0 %v788
    %v856 = vpop.f32.mrb[0].mxu0
    %v857 = vadd.f32 0.0, %v856
    %v858 = vpop.f32.mrb[0].mxu0
    %v859 = vadd.f32 0.0, %v858
    %860 = vdwg.mxu0
    %861 = vmatprep.subr.mxu0 %v27
    %862 = vmatpush1.msra.mxu0 %v26
    %863 = vmatprep.subr.mxu0 0.0
    %864 = vmatpush1.msra.mxu0 0.0
    %865 = vmatprep.subr.mxu0 0.0
    %866 = vmatpush1.msra.mxu0 0.0
    %867 = vmatprep.subr.mxu0 0.0
    %868 = vmatpush1.msra.mxu0 0.0
    %869 = vmatprep.subr.mxu0 0.0
    %870 = vmatpush1.msra.mxu0 0.0
    %871 = vmatprep.subr.mxu0 0.0
    %872 = vmatpush1.msra.mxu0 0.0
    %873 = vmatprep.subr.mxu0 0.0
    %874 = vmatpush1.msra.mxu0 0.0
    %875 = vmatprep.subr.mxu0 0.0
    %876 = vmatpush1.msra.mxu0 0.0
    %877 = vmatprep.subr.mxu0 0.0
    %878 = vmatpush1.msra.mxu0 0.0
    %879 = vmatprep.subr.mxu0 0.0
    %880 = vmatpush1.msra.mxu0 0.0
    %881 = vmatprep.subr.mxu0 0.0
    %882 = vmatpush1.msra.mxu0 0.0
    %883 = vmatprep.subr.mxu0 0.0
    %884 = vmatpush1.msra.mxu0 0.0
    %885 = vmatprep.subr.mxu0 0.0
    %886 = vmatpush1.msra.mxu0 0.0
    %887 = vmatprep.subr.mxu0 0.0
    %888 = vmatpush1.msra.mxu0 0.0
    %889 = vmatprep.subr.mxu0 0.0
    %890 = vmatpush1.msra.mxu0 0.0
    %891 = vmatprep.subr.mxu0 0.0
    %892 = vmatpush1.msra.mxu0 0.0
    %893 = vmatprep.subr.mxu0 0.0
    %894 = vmatpush1.msra.mxu0 0.0
    %895 = vmatprep.subr.mxu0 0.0
    %896 = vmatpush1.msra.mxu0 0.0
    %897 = vmatprep.subr.mxu0 0.0
    %898 = vmatpush1.msra.mxu0 0.0
    %899 = vmatprep.subr.mxu0 0.0
    %900 = vmatpush1.msra.mxu0 0.0
    %901 = vmatprep.subr.mxu0 0.0
    %902 = vmatpush1.msra.mxu0 0.0
    %903 = vmatprep.subr.mxu0 0.0
    %904 = vmatpush1.msra.mxu0 0.0
    %905 = vmatprep.subr.mxu0 0.0
    %906 = vmatpush1.msra.mxu0 0.0
    %907 = vmatprep.subr.mxu0 0.0
    %908 = vmatpush1.msra.mxu0 0.0
    %909 = vmatprep.subr.mxu0 0.0
    %910 = vmatpush1.msra.mxu0 0.0
    %911 = vmatprep.subr.mxu0 0.0
    %912 = vmatpush1.msra.mxu0 0.0
    %913 = vmatprep.subr.mxu0 0.0
    %914 = vmatpush1.msra.mxu0 0.0
    %915 = vmatprep.subr.mxu0 0.0
    %916 = vmatpush1.msra.mxu0 0.0
    %917 = vmatprep.subr.mxu0 0.0
    %918 = vmatpush1.msra.mxu0 0.0
    %919 = vmatprep.subr.mxu0 0.0
    %920 = vmatpush1.msra.mxu0 0.0
    %921 = vmatprep.subr.mxu0 0.0
    %922 = vmatpush1.msra.mxu0 0.0
    %923 = vmatprep.subr.mxu0 0.0
    %924 = vmatpush1.msra.mxu0 0.0
    %925 = vmatprep.mubr.f32.mxu0 0.0
    %926 = vmatmul.mubr.f32.gmra.mrb[0].mxu0 %v788
    %v927 = vpop.f32.mrb[0].mxu0
    %v928 = vadd.f32 0.0, %v927
    %v929 = vpop.f32.mrb[0].mxu0
    %v930 = vadd.f32 0.0, %v929
    %931 = vdwg.mxu0
    %v932 = vadd.f32 %v781, %v857
    %v933 = vadd.f32 %v782, %v859
    %v934 = vadd.f32 %v783, %v928
    %v935 = vadd.f32 %v784, %v930
    %936 = vrot.lane.b32.xlu0 %v24, 127
    %v937 = vpop.permute.xlu0 %936
    %938 = vrot.lane.b32.xlu0 %v25, 127
    %v939 = vpop.permute.xlu0 %938
    %940 = vrot.lane.b32.xlu0 %v26, 127
    %v941 = vpop.permute.xlu0 %940
    %942 = vrot.lane.b32.xlu0 %v27, 127
    %v943 = vpop.permute.xlu0 %942
    %vm944 = vcmp.lt.s32.totalorder %v37, 127
    %v945 = vsel %vm944, %v941, %v943
    %v946 = vsel %vm944, %v939, %v941
    %v947 = vsel %vm944, %v937, %v939
    %v948 = vsel %vm944, %v943, %v937
    %s949 = scalar_lea.vmem %s5, 16
    %v950 = vld [vmem:[%s949] sm:$0xf]
    %v952 = vlaneseq
    %v953 = vshrl.u32 %v952, 7
    %v954 = vsub.s32 0, %v953
    %v955 = vrot.slane %v950, %v954
    %v956 = vlaneseq
    %v957 = vshrl.u32 %v956, 7
    %v958 = vsub.s32 1, %v957
    %v959 = vrot.slane %v950, %v958
    %v960 = vlaneseq
    %v961 = vshrl.u32 %v960, 7
    %v962 = vsub.s32 2, %v961
    %v963 = vrot.slane %v950, %v962
    %v964 = vlaneseq
    %v965 = vshrl.u32 %v964, 7
    %v966 = vsub.s32 3, %v965
    %v967 = vrot.slane %v950, %v966
    %v972 = vmul.f32 %v947, %v955
    %v973 = vmul.f32 %v946, %v959
    %v974 = vmul.f32 %v945, %v963
    %v975 = vmul.f32 %v948, %v967
    %s976 = scalar_lea.vmem %s1, 40
    %v977 = vld [vmem:[%s976] sm:$0xff]
    %v979 = vsel %vm112, %v977, 0
    %981 = vmatprep.subr.mxu0 %v973
    %982 = vmatpush1.msra.mxu0 %v972
    %983 = vmatprep.subr.mxu0 0.0
    %984 = vmatpush1.msra.mxu0 0.0
    %985 = vmatprep.subr.mxu0 0.0
    %986 = vmatpush1.msra.mxu0 0.0
    %987 = vmatprep.subr.mxu0 0.0
    %988 = vmatpush1.msra.mxu0 0.0
    %989 = vmatprep.subr.mxu0 0.0
    %990 = vmatpush1.msra.mxu0 0.0
    %991 = vmatprep.subr.mxu0 0.0
    %992 = vmatpush1.msra.mxu0 0.0
    %993 = vmatprep.subr.mxu0 0.0
    %994 = vmatpush1.msra.mxu0 0.0
    %995 = vmatprep.subr.mxu0 0.0
    %996 = vmatpush1.msra.mxu0 0.0
    %997 = vmatprep.subr.mxu0 0.0
    %998 = vmatpush1.msra.mxu0 0.0
    %999 = vmatprep.subr.mxu0 0.0
    %1000 = vmatpush1.msra.mxu0 0.0
    %1001 = vmatprep.subr.mxu0 0.0
    %1002 = vmatpush1.msra.mxu0 0.0
    %1003 = vmatprep.subr.mxu0 0.0
    %1004 = vmatpush1.msra.mxu0 0.0
    %1005 = vmatprep.subr.mxu0 0.0
    %1006 = vmatpush1.msra.mxu0 0.0
    %1007 = vmatprep.subr.mxu0 0.0
    %1008 = vmatpush1.msra.mxu0 0.0
    %1009 = vmatprep.subr.mxu0 0.0
    %1010 = vmatpush1.msra.mxu0 0.0
    %1011 = vmatprep.subr.mxu0 0.0
    %1012 = vmatpush1.msra.mxu0 0.0
    %1013 = vmatprep.subr.mxu0 0.0
    %1014 = vmatpush1.msra.mxu0 0.0
    %1015 = vmatprep.subr.mxu0 0.0
    %1016 = vmatpush1.msra.mxu0 0.0
    %1017 = vmatprep.subr.mxu0 0.0
    %1018 = vmatpush1.msra.mxu0 0.0
    %1019 = vmatprep.subr.mxu0 0.0
    %1020 = vmatpush1.msra.mxu0 0.0
    %1021 = vmatprep.subr.mxu0 0.0
    %1022 = vmatpush1.msra.mxu0 0.0
    %1023 = vmatprep.subr.mxu0 0.0
    %1024 = vmatpush1.msra.mxu0 0.0
    %1025 = vmatprep.subr.mxu0 0.0
    %1026 = vmatpush1.msra.mxu0 0.0
    %1027 = vmatprep.subr.mxu0 0.0
    %1028 = vmatpush1.msra.mxu0 0.0
    %1029 = vmatprep.subr.mxu0 0.0
    %1030 = vmatpush1.msra.mxu0 0.0
    %1031 = vmatprep.subr.mxu0 0.0
    %1032 = vmatpush1.msra.mxu0 0.0
    %1033 = vmatprep.subr.mxu0 0.0
    %1034 = vmatpush1.msra.mxu0 0.0
    %1035 = vmatprep.subr.mxu0 0.0
    %1036 = vmatpush1.msra.mxu0 0.0
    %1037 = vmatprep.subr.mxu0 0.0
    %1038 = vmatpush1.msra.mxu0 0.0
    %1039 = vmatprep.subr.mxu0 0.0
    %1040 = vmatpush1.msra.mxu0 0.0
    %1041 = vmatprep.subr.mxu0 0.0
    %1042 = vmatpush1.msra.mxu0 0.0
    %1043 = vmatprep.subr.mxu0 0.0
    %1044 = vmatpush1.msra.mxu0 0.0
    %1045 = vmatprep.mubr.f32.mxu0 0.0
    %1046 = vmatmul.mubr.f32.gmra.mrb[0].mxu0 %v979
    %v1047 = vpop.f32.mrb[0].mxu0
    %v1048 = vadd.f32 0.0, %v1047
    %v1049 = vpop.f32.mrb[0].mxu0
    %v1050 = vadd.f32 0.0, %v1049
    %1051 = vdwg.mxu0
    %1052 = vmatprep.subr.mxu0 %v975
    %1053 = vmatpush1.msra.mxu0 %v974
    %1054 = vmatprep.subr.mxu0 0.0
    %1055 = vmatpush1.msra.mxu0 0.0
    %1056 = vmatprep.subr.mxu0 0.0
    %1057 = vmatpush1.msra.mxu0 0.0
    %1058 = vmatprep.subr.mxu0 0.0
    %1059 = vmatpush1.msra.mxu0 0.0
    %1060 = vmatprep.subr.mxu0 0.0
    %1061 = vmatpush1.msra.mxu0 0.0
    %1062 = vmatprep.subr.mxu0 0.0
    %1063 = vmatpush1.msra.mxu0 0.0
    %1064 = vmatprep.subr.mxu0 0.0
    %1065 = vmatpush1.msra.mxu0 0.0
    %1066 = vmatprep.subr.mxu0 0.0
    %1067 = vmatpush1.msra.mxu0 0.0
    %1068 = vmatprep.subr.mxu0 0.0
    %1069 = vmatpush1.msra.mxu0 0.0
    %1070 = vmatprep.subr.mxu0 0.0
    %1071 = vmatpush1.msra.mxu0 0.0
    %1072 = vmatprep.subr.mxu0 0.0
    %1073 = vmatpush1.msra.mxu0 0.0
    %1074 = vmatprep.subr.mxu0 0.0
    %1075 = vmatpush1.msra.mxu0 0.0
    %1076 = vmatprep.subr.mxu0 0.0
    %1077 = vmatpush1.msra.mxu0 0.0
    %1078 = vmatprep.subr.mxu0 0.0
    %1079 = vmatpush1.msra.mxu0 0.0
    %1080 = vmatprep.subr.mxu0 0.0
    %1081 = vmatpush1.msra.mxu0 0.0
    %1082 = vmatprep.subr.mxu0 0.0
    %1083 = vmatpush1.msra.mxu0 0.0
    %1084 = vmatprep.subr.mxu0 0.0
    %1085 = vmatpush1.msra.mxu0 0.0
    %1086 = vmatprep.subr.mxu0 0.0
    %1087 = vmatpush1.msra.mxu0 0.0
    %1088 = vmatprep.subr.mxu0 0.0
    %1089 = vmatpush1.msra.mxu0 0.0
    %1090 = vmatprep.subr.mxu0 0.0
    %1091 = vmatpush1.msra.mxu0 0.0
    %1092 = vmatprep.subr.mxu0 0.0
    %1093 = vmatpush1.msra.mxu0 0.0
    %1094 = vmatprep.subr.mxu0 0.0
    %1095 = vmatpush1.msra.mxu0 0.0
    %1096 = vmatprep.subr.mxu0 0.0
    %1097 = vmatpush1.msra.mxu0 0.0
    %1098 = vmatprep.subr.mxu0 0.0
    %1099 = vmatpush1.msra.mxu0 0.0
    %1100 = vmatprep.subr.mxu0 0.0
    %1101 = vmatpush1.msra.mxu0 0.0
    %1102 = vmatprep.subr.mxu0 0.0
    %1103 = vmatpush1.msra.mxu0 0.0
    %1104 = vmatprep.subr.mxu0 0.0
    %1105 = vmatpush1.msra.mxu0 0.0
    %1106 = vmatprep.subr.mxu0 0.0
    %1107 = vmatpush1.msra.mxu0 0.0
    %1108 = vmatprep.subr.mxu0 0.0
    %1109 = vmatpush1.msra.mxu0 0.0
    %1110 = vmatprep.subr.mxu0 0.0
    %1111 = vmatpush1.msra.mxu0 0.0
    %1112 = vmatprep.subr.mxu0 0.0
    %1113 = vmatpush1.msra.mxu0 0.0
    %1114 = vmatprep.subr.mxu0 0.0
    %1115 = vmatpush1.msra.mxu0 0.0
    %1116 = vmatprep.mubr.f32.mxu0 0.0
    %1117 = vmatmul.mubr.f32.gmra.mrb[0].mxu0 %v979
    %v1118 = vpop.f32.mrb[0].mxu0
    %v1119 = vadd.f32 0.0, %v1118
    %v1120 = vpop.f32.mrb[0].mxu0
    %v1121 = vadd.f32 0.0, %v1120
    %1122 = vdwg.mxu0
    %v1123 = vadd.f32 %v932, %v1048
    %v1124 = vadd.f32 %v933, %v1050
    %v1125 = vadd.f32 %v934, %v1119
    %v1126 = vadd.f32 %v935, %v1121
    %1127 = vrot.lane.b32.xlu0 %v24, 113
    %v1128 = vpop.permute.xlu0 %1127
    %1129 = vrot.lane.b32.xlu0 %v25, 113
    %v1130 = vpop.permute.xlu0 %1129
    %1131 = vrot.lane.b32.xlu0 %v26, 113
    %v1132 = vpop.permute.xlu0 %1131
    %1133 = vrot.lane.b32.xlu0 %v27, 113
    %v1134 = vpop.permute.xlu0 %1133
    %vm1135 = vcmp.lt.s32.totalorder %v37, 113
    %v1136 = vsel %vm1135, %v1132, %v1134
    %v1137 = vsel %vm1135, %v1130, %v1132
    %v1138 = vsel %vm1135, %v1128, %v1130
    %v1139 = vsel %vm1135, %v1134, %v1128
    %s1140 = scalar_lea.vmem %s5, 20
    %v1141 = vld [vmem:[%s1140] sm:$0xf]
    %v1143 = vlaneseq
    %v1144 = vshrl.u32 %v1143, 7
    %v1145 = vsub.s32 0, %v1144
    %v1146 = vrot.slane %v1141, %v1145
    %v1147 = vlaneseq
    %v1148 = vshrl.u32 %v1147, 7
    %v1149 = vsub.s32 1, %v1148
    %v1150 = vrot.slane %v1141, %v1149
    %v1151 = vlaneseq
    %v1152 = vshrl.u32 %v1151, 7
    %v1153 = vsub.s32 2, %v1152
    %v1154 = vrot.slane %v1141, %v1153
    %v1155 = vlaneseq
    %v1156 = vshrl.u32 %v1155, 7
    %v1157 = vsub.s32 3, %v1156
    %v1158 = vrot.slane %v1141, %v1157
    %v1163 = vmul.f32 %v1138, %v1146
    %v1164 = vmul.f32 %v1137, %v1150
    %v1165 = vmul.f32 %v1136, %v1154
    %v1166 = vmul.f32 %v1139, %v1158
    %s1167 = scalar_lea.vmem %s1, 48
    %v1168 = vld [vmem:[%s1167] sm:$0xff]
    %v1170 = vsel %vm112, %v1168, 0
    %1172 = vmatprep.subr.mxu0 %v1164
    %1173 = vmatpush1.msra.mxu0 %v1163
    %1174 = vmatprep.subr.mxu0 0.0
    %1175 = vmatpush1.msra.mxu0 0.0
    %1176 = vmatprep.subr.mxu0 0.0
    %1177 = vmatpush1.msra.mxu0 0.0
    %1178 = vmatprep.subr.mxu0 0.0
    %1179 = vmatpush1.msra.mxu0 0.0
    %1180 = vmatprep.subr.mxu0 0.0
    %1181 = vmatpush1.msra.mxu0 0.0
    %1182 = vmatprep.subr.mxu0 0.0
    %1183 = vmatpush1.msra.mxu0 0.0
    %1184 = vmatprep.subr.mxu0 0.0
    %1185 = vmatpush1.msra.mxu0 0.0
    %1186 = vmatprep.subr.mxu0 0.0
    %1187 = vmatpush1.msra.mxu0 0.0
    %1188 = vmatprep.subr.mxu0 0.0
    %1189 = vmatpush1.msra.mxu0 0.0
    %1190 = vmatprep.subr.mxu0 0.0
    %1191 = vmatpush1.msra.mxu0 0.0
    %1192 = vmatprep.subr.mxu0 0.0
    %1193 = vmatpush1.msra.mxu0 0.0
    %1194 = vmatprep.subr.mxu0 0.0
    %1195 = vmatpush1.msra.mxu0 0.0
    %1196 = vmatprep.subr.mxu0 0.0
    %1197 = vmatpush1.msra.mxu0 0.0
    %1198 = vmatprep.subr.mxu0 0.0
    %1199 = vmatpush1.msra.mxu0 0.0
    %1200 = vmatprep.subr.mxu0 0.0
    %1201 = vmatpush1.msra.mxu0 0.0
    %1202 = vmatprep.subr.mxu0 0.0
    %1203 = vmatpush1.msra.mxu0 0.0
    %1204 = vmatprep.subr.mxu0 0.0
    %1205 = vmatpush1.msra.mxu0 0.0
    %1206 = vmatprep.subr.mxu0 0.0
    %1207 = vmatpush1.msra.mxu0 0.0
    %1208 = vmatprep.subr.mxu0 0.0
    %1209 = vmatpush1.msra.mxu0 0.0
    %1210 = vmatprep.subr.mxu0 0.0
    %1211 = vmatpush1.msra.mxu0 0.0
    %1212 = vmatprep.subr.mxu0 0.0
    %1213 = vmatpush1.msra.mxu0 0.0
    %1214 = vmatprep.subr.mxu0 0.0
    %1215 = vmatpush1.msra.mxu0 0.0
    %1216 = vmatprep.subr.mxu0 0.0
    %1217 = vmatpush1.msra.mxu0 0.0
    %1218 = vmatprep.subr.mxu0 0.0
    %1219 = vmatpush1.msra.mxu0 0.0
    %1220 = vmatprep.subr.mxu0 0.0
    %1221 = vmatpush1.msra.mxu0 0.0
    %1222 = vmatprep.subr.mxu0 0.0
    %1223 = vmatpush1.msra.mxu0 0.0
    %1224 = vmatprep.subr.mxu0 0.0
    %1225 = vmatpush1.msra.mxu0 0.0
    %1226 = vmatprep.subr.mxu0 0.0
    %1227 = vmatpush1.msra.mxu0 0.0
    %1228 = vmatprep.subr.mxu0 0.0
    %1229 = vmatpush1.msra.mxu0 0.0
    %1230 = vmatprep.subr.mxu0 0.0
    %1231 = vmatpush1.msra.mxu0 0.0
    %1232 = vmatprep.subr.mxu0 0.0
    %1233 = vmatpush1.msra.mxu0 0.0
    %1234 = vmatprep.subr.mxu0 0.0
    %1235 = vmatpush1.msra.mxu0 0.0
    %1236 = vmatprep.mubr.f32.mxu0 0.0
    %1237 = vmatmul.mubr.f32.gmra.mrb[0].mxu0 %v1170
    %v1238 = vpop.f32.mrb[0].mxu0
    %v1239 = vadd.f32 0.0, %v1238
    %v1240 = vpop.f32.mrb[0].mxu0
    %v1241 = vadd.f32 0.0, %v1240
    %1242 = vdwg.mxu0
    %1243 = vmatprep.subr.mxu0 %v1166
    %1244 = vmatpush1.msra.mxu0 %v1165
    %1245 = vmatprep.subr.mxu0 0.0
    %1246 = vmatpush1.msra.mxu0 0.0
    %1247 = vmatprep.subr.mxu0 0.0
    %1248 = vmatpush1.msra.mxu0 0.0
    %1249 = vmatprep.subr.mxu0 0.0
    %1250 = vmatpush1.msra.mxu0 0.0
    %1251 = vmatprep.subr.mxu0 0.0
    %1252 = vmatpush1.msra.mxu0 0.0
    %1253 = vmatprep.subr.mxu0 0.0
    %1254 = vmatpush1.msra.mxu0 0.0
    %1255 = vmatprep.subr.mxu0 0.0
    %1256 = vmatpush1.msra.mxu0 0.0
    %1257 = vmatprep.subr.mxu0 0.0
    %1258 = vmatpush1.msra.mxu0 0.0
    %1259 = vmatprep.subr.mxu0 0.0
    %1260 = vmatpush1.msra.mxu0 0.0
    %1261 = vmatprep.subr.mxu0 0.0
    %1262 = vmatpush1.msra.mxu0 0.0
    %1263 = vmatprep.subr.mxu0 0.0
    %1264 = vmatpush1.msra.mxu0 0.0
    %1265 = vmatprep.subr.mxu0 0.0
    %1266 = vmatpush1.msra.mxu0 0.0
    %1267 = vmatprep.subr.mxu0 0.0
    %1268 = vmatpush1.msra.mxu0 0.0
    %1269 = vmatprep.subr.mxu0 0.0
    %1270 = vmatpush1.msra.mxu0 0.0
    %1271 = vmatprep.subr.mxu0 0.0
    %1272 = vmatpush1.msra.mxu0 0.0
    %1273 = vmatprep.subr.mxu0 0.0
    %1274 = vmatpush1.msra.mxu0 0.0
    %1275 = vmatprep.subr.mxu0 0.0
    %1276 = vmatpush1.msra.mxu0 0.0
    %1277 = vmatprep.subr.mxu0 0.0
    %1278 = vmatpush1.msra.mxu0 0.0
    %1279 = vmatprep.subr.mxu0 0.0
    %1280 = vmatpush1.msra.mxu0 0.0
    %1281 = vmatprep.subr.mxu0 0.0
    %1282 = vmatpush1.msra.mxu0 0.0
    %1283 = vmatprep.subr.mxu0 0.0
    %1284 = vmatpush1.msra.mxu0 0.0
    %1285 = vmatprep.subr.mxu0 0.0
    %1286 = vmatpush1.msra.mxu0 0.0
    %1287 = vmatprep.subr.mxu0 0.0
    %1288 = vmatpush1.msra.mxu0 0.0
    %1289 = vmatprep.subr.mxu0 0.0
    %1290 = vmatpush1.msra.mxu0 0.0
    %1291 = vmatprep.subr.mxu0 0.0
    %1292 = vmatpush1.msra.mxu0 0.0
    %1293 = vmatprep.subr.mxu0 0.0
    %1294 = vmatpush1.msra.mxu0 0.0
    %1295 = vmatprep.subr.mxu0 0.0
    %1296 = vmatpush1.msra.mxu0 0.0
    %1297 = vmatprep.subr.mxu0 0.0
    %1298 = vmatpush1.msra.mxu0 0.0
    %1299 = vmatprep.subr.mxu0 0.0
    %1300 = vmatpush1.msra.mxu0 0.0
    %1301 = vmatprep.subr.mxu0 0.0
    %1302 = vmatpush1.msra.mxu0 0.0
    %1303 = vmatprep.subr.mxu0 0.0
    %1304 = vmatpush1.msra.mxu0 0.0
    %1305 = vmatprep.subr.mxu0 0.0
    %1306 = vmatpush1.msra.mxu0 0.0
    %1307 = vmatprep.mubr.f32.mxu0 0.0
    %1308 = vmatmul.mubr.f32.gmra.mrb[0].mxu0 %v1170
    %v1309 = vpop.f32.mrb[0].mxu0
    %v1310 = vadd.f32 0.0, %v1309
    %v1311 = vpop.f32.mrb[0].mxu0
    %v1312 = vadd.f32 0.0, %v1311
    %1313 = vdwg.mxu0
    %v1314 = vadd.f32 %v1123, %v1239
    %v1315 = vadd.f32 %v1124, %v1241
    %v1316 = vadd.f32 %v1125, %v1310
    %v1317 = vadd.f32 %v1126, %v1312
    %1318 = vrot.lane.b32.xlu0 %v24, 112
    %v1319 = vpop.permute.xlu0 %1318
    %1320 = vrot.lane.b32.xlu0 %v25, 112
    %v1321 = vpop.permute.xlu0 %1320
    %1322 = vrot.lane.b32.xlu0 %v26, 112
    %v1323 = vpop.permute.xlu0 %1322
    %1324 = vrot.lane.b32.xlu0 %v27, 112
    %v1325 = vpop.permute.xlu0 %1324
    %vm1326 = vcmp.lt.s32.totalorder %v37, 112
    %v1327 = vsel %vm1326, %v1323, %v1325
    %v1328 = vsel %vm1326, %v1321, %v1323
    %v1329 = vsel %vm1326, %v1319, %v1321
    %v1330 = vsel %vm1326, %v1325, %v1319
    %s1331 = scalar_lea.vmem %s5, 24
    %v1332 = vld [vmem:[%s1331] sm:$0xf]
    %v1334 = vlaneseq
    %v1335 = vshrl.u32 %v1334, 7
    %v1336 = vsub.s32 0, %v1335
    %v1337 = vrot.slane %v1332, %v1336
    %v1338 = vlaneseq
    %v1339 = vshrl.u32 %v1338, 7
    %v1340 = vsub.s32 1, %v1339
    %v1341 = vrot.slane %v1332, %v1340
    %v1342 = vlaneseq
    %v1343 = vshrl.u32 %v1342, 7
    %v1344 = vsub.s32 2, %v1343
    %v1345 = vrot.slane %v1332, %v1344
    %v1346 = vlaneseq
    %v1347 = vshrl.u32 %v1346, 7
    %v1348 = vsub.s32 3, %v1347
    %v1349 = vrot.slane %v1332, %v1348
    %v1354 = vmul.f32 %v1329, %v1337
    %v1355 = vmul.f32 %v1328, %v1341
    %v1356 = vmul.f32 %v1327, %v1345
    %v1357 = vmul.f32 %v1330, %v1349
    %s1358 = scalar_lea.vmem %s1, 56
    %v1359 = vld [vmem:[%s1358] sm:$0xff]
    %v1361 = vsel %vm112, %v1359, 0
    %1363 = vmatprep.subr.mxu0 %v1355
    %1364 = vmatpush1.msra.mxu0 %v1354
    %1365 = vmatprep.subr.mxu0 0.0
    %1366 = vmatpush1.msra.mxu0 0.0
    %1367 = vmatprep.subr.mxu0 0.0
    %1368 = vmatpush1.msra.mxu0 0.0
    %1369 = vmatprep.subr.mxu0 0.0
    %1370 = vmatpush1.msra.mxu0 0.0
    %1371 = vmatprep.subr.mxu0 0.0
    %1372 = vmatpush1.msra.mxu0 0.0
    %1373 = vmatprep.subr.mxu0 0.0
    %1374 = vmatpush1.msra.mxu0 0.0
    %1375 = vmatprep.subr.mxu0 0.0
    %1376 = vmatpush1.msra.mxu0 0.0
    %1377 = vmatprep.subr.mxu0 0.0
    %1378 = vmatpush1.msra.mxu0 0.0
    %1379 = vmatprep.subr.mxu0 0.0
    %1380 = vmatpush1.msra.mxu0 0.0
    %1381 = vmatprep.subr.mxu0 0.0
    %1382 = vmatpush1.msra.mxu0 0.0
    %1383 = vmatprep.subr.mxu0 0.0
    %1384 = vmatpush1.msra.mxu0 0.0
    %1385 = vmatprep.subr.mxu0 0.0
    %1386 = vmatpush1.msra.mxu0 0.0
    %1387 = vmatprep.subr.mxu0 0.0
    %1388 = vmatpush1.msra.mxu0 0.0
    %1389 = vmatprep.subr.mxu0 0.0
    %1390 = vmatpush1.msra.mxu0 0.0
    %1391 = vmatprep.subr.mxu0 0.0
    %1392 = vmatpush1.msra.mxu0 0.0
    %1393 = vmatprep.subr.mxu0 0.0
    %1394 = vmatpush1.msra.mxu0 0.0
    %1395 = vmatprep.subr.mxu0 0.0
    %1396 = vmatpush1.msra.mxu0 0.0
    %1397 = vmatprep.subr.mxu0 0.0
    %1398 = vmatpush1.msra.mxu0 0.0
    %1399 = vmatprep.subr.mxu0 0.0
    %1400 = vmatpush1.msra.mxu0 0.0
    %1401 = vmatprep.subr.mxu0 0.0
    %1402 = vmatpush1.msra.mxu0 0.0
    %1403 = vmatprep.subr.mxu0 0.0
    %1404 = vmatpush1.msra.mxu0 0.0
    %1405 = vmatprep.subr.mxu0 0.0
    %1406 = vmatpush1.msra.mxu0 0.0
    %1407 = vmatprep.subr.mxu0 0.0
    %1408 = vmatpush1.msra.mxu0 0.0
    %1409 = vmatprep.subr.mxu0 0.0
    %1410 = vmatpush1.msra.mxu0 0.0
    %1411 = vmatprep.subr.mxu0 0.0
    %1412 = vmatpush1.msra.mxu0 0.0
    %1413 = vmatprep.subr.mxu0 0.0
    %1414 = vmatpush1.msra.mxu0 0.0
    %1415 = vmatprep.subr.mxu0 0.0
    %1416 = vmatpush1.msra.mxu0 0.0
    %1417 = vmatprep.subr.mxu0 0.0
    %1418 = vmatpush1.msra.mxu0 0.0
    %1419 = vmatprep.subr.mxu0 0.0
    %1420 = vmatpush1.msra.mxu0 0.0
    %1421 = vmatprep.subr.mxu0 0.0
    %1422 = vmatpush1.msra.mxu0 0.0
    %1423 = vmatprep.subr.mxu0 0.0
    %1424 = vmatpush1.msra.mxu0 0.0
    %1425 = vmatprep.subr.mxu0 0.0
    %1426 = vmatpush1.msra.mxu0 0.0
    %1427 = vmatprep.mubr.f32.mxu0 0.0
    %1428 = vmatmul.mubr.f32.gmra.mrb[0].mxu0 %v1361
    %v1429 = vpop.f32.mrb[0].mxu0
    %v1430 = vadd.f32 0.0, %v1429
    %v1431 = vpop.f32.mrb[0].mxu0
    %v1432 = vadd.f32 0.0, %v1431
    %1433 = vdwg.mxu0
    %1434 = vmatprep.subr.mxu0 %v1357
    %1435 = vmatpush1.msra.mxu0 %v1356
    %1436 = vmatprep.subr.mxu0 0.0
    %1437 = vmatpush1.msra.mxu0 0.0
    %1438 = vmatprep.subr.mxu0 0.0
    %1439 = vmatpush1.msra.mxu0 0.0
    %1440 = vmatprep.subr.mxu0 0.0
    %1441 = vmatpush1.msra.mxu0 0.0
    %1442 = vmatprep.subr.mxu0 0.0
    %1443 = vmatpush1.msra.mxu0 0.0
    %1444 = vmatprep.subr.mxu0 0.0
    %1445 = vmatpush1.msra.mxu0 0.0
    %1446 = vmatprep.subr.mxu0 0.0
    %1447 = vmatpush1.msra.mxu0 0.0
    %1448 = vmatprep.subr.mxu0 0.0
    %1449 = vmatpush1.msra.mxu0 0.0
    %1450 = vmatprep.subr.mxu0 0.0
    %1451 = vmatpush1.msra.mxu0 0.0
    %1452 = vmatprep.subr.mxu0 0.0
    %1453 = vmatpush1.msra.mxu0 0.0
    %1454 = vmatprep.subr.mxu0 0.0
    %1455 = vmatpush1.msra.mxu0 0.0
    %1456 = vmatprep.subr.mxu0 0.0
    %1457 = vmatpush1.msra.mxu0 0.0
    %1458 = vmatprep.subr.mxu0 0.0
    %1459 = vmatpush1.msra.mxu0 0.0
    %1460 = vmatprep.subr.mxu0 0.0
    %1461 = vmatpush1.msra.mxu0 0.0
    %1462 = vmatprep.subr.mxu0 0.0
    %1463 = vmatpush1.msra.mxu0 0.0
    %1464 = vmatprep.subr.mxu0 0.0
    %1465 = vmatpush1.msra.mxu0 0.0
    %1466 = vmatprep.subr.mxu0 0.0
    %1467 = vmatpush1.msra.mxu0 0.0
    %1468 = vmatprep.subr.mxu0 0.0
    %1469 = vmatpush1.msra.mxu0 0.0
    %1470 = vmatprep.subr.mxu0 0.0
    %1471 = vmatpush1.msra.mxu0 0.0
    %1472 = vmatprep.subr.mxu0 0.0
    %1473 = vmatpush1.msra.mxu0 0.0
    %1474 = vmatprep.subr.mxu0 0.0
    %1475 = vmatpush1.msra.mxu0 0.0
    %1476 = vmatprep.subr.mxu0 0.0
    %1477 = vmatpush1.msra.mxu0 0.0
    %1478 = vmatprep.subr.mxu0 0.0
    %1479 = vmatpush1.msra.mxu0 0.0
    %1480 = vmatprep.subr.mxu0 0.0
    %1481 = vmatpush1.msra.mxu0 0.0
    %1482 = vmatprep.subr.mxu0 0.0
    %1483 = vmatpush1.msra.mxu0 0.0
    %1484 = vmatprep.subr.mxu0 0.0
    %1485 = vmatpush1.msra.mxu0 0.0
    %1486 = vmatprep.subr.mxu0 0.0
    %1487 = vmatpush1.msra.mxu0 0.0
    %1488 = vmatprep.subr.mxu0 0.0
    %1489 = vmatpush1.msra.mxu0 0.0
    %1490 = vmatprep.subr.mxu0 0.0
    %1491 = vmatpush1.msra.mxu0 0.0
    %1492 = vmatprep.subr.mxu0 0.0
    %1493 = vmatpush1.msra.mxu0 0.0
    %1494 = vmatprep.subr.mxu0 0.0
    %1495 = vmatpush1.msra.mxu0 0.0
    %1496 = vmatprep.subr.mxu0 0.0
    %1497 = vmatpush1.msra.mxu0 0.0
    %1498 = vmatprep.mubr.f32.mxu0 0.0
    %1499 = vmatmul.mubr.f32.gmra.mrb[0].mxu0 %v1361
    %v1500 = vpop.f32.mrb[0].mxu0
    %v1501 = vadd.f32 0.0, %v1500
    %v1502 = vpop.f32.mrb[0].mxu0
    %v1503 = vadd.f32 0.0, %v1502
    %1504 = vdwg.mxu0
    %v1505 = vadd.f32 %v1314, %v1430
    %v1506 = vadd.f32 %v1315, %v1432
    %v1507 = vadd.f32 %v1316, %v1501
    %v1508 = vadd.f32 %v1317, %v1503
    %1509 = vrot.lane.b32.xlu0 %v24, 111
    %v1510 = vpop.permute.xlu0 %1509
    %1511 = vrot.lane.b32.xlu0 %v25, 111
    %v1512 = vpop.permute.xlu0 %1511
    %1513 = vrot.lane.b32.xlu0 %v26, 111
    %v1514 = vpop.permute.xlu0 %1513
    %1515 = vrot.lane.b32.xlu0 %v27, 111
    %v1516 = vpop.permute.xlu0 %1515
    %vm1517 = vcmp.lt.s32.totalorder %v37, 111
    %v1518 = vsel %vm1517, %v1514, %v1516
    %v1519 = vsel %vm1517, %v1512, %v1514
    %v1520 = vsel %vm1517, %v1510, %v1512
    %v1521 = vsel %vm1517, %v1516, %v1510
    %s1522 = scalar_lea.vmem %s5, 28
    %v1523 = vld [vmem:[%s1522] sm:$0xf]
    %v1525 = vlaneseq
    %v1526 = vshrl.u32 %v1525, 7
    %v1527 = vsub.s32 0, %v1526
    %v1528 = vrot.slane %v1523, %v1527
    %v1529 = vlaneseq
    %v1530 = vshrl.u32 %v1529, 7
    %v1531 = vsub.s32 1, %v1530
    %v1532 = vrot.slane %v1523, %v1531
    %v1533 = vlaneseq
    %v1534 = vshrl.u32 %v1533, 7
    %v1535 = vsub.s32 2, %v1534
    %v1536 = vrot.slane %v1523, %v1535
    %v1537 = vlaneseq
    %v1538 = vshrl.u32 %v1537, 7
    %v1539 = vsub.s32 3, %v1538
    %v1540 = vrot.slane %v1523, %v1539
    %v1545 = vmul.f32 %v1520, %v1528
    %v1546 = vmul.f32 %v1519, %v1532
    %v1547 = vmul.f32 %v1518, %v1536
    %v1548 = vmul.f32 %v1521, %v1540
    %s1549 = scalar_lea.vmem %s1, 64
    %v1550 = vld [vmem:[%s1549] sm:$0xff]
    %v1552 = vsel %vm112, %v1550, 0
    %1554 = vmatprep.subr.mxu0 %v1546
    %1555 = vmatpush1.msra.mxu0 %v1545
    %1556 = vmatprep.subr.mxu0 0.0
    %1557 = vmatpush1.msra.mxu0 0.0
    %1558 = vmatprep.subr.mxu0 0.0
    %1559 = vmatpush1.msra.mxu0 0.0
    %1560 = vmatprep.subr.mxu0 0.0
    %1561 = vmatpush1.msra.mxu0 0.0
    %1562 = vmatprep.subr.mxu0 0.0
    %1563 = vmatpush1.msra.mxu0 0.0
    %1564 = vmatprep.subr.mxu0 0.0
    %1565 = vmatpush1.msra.mxu0 0.0
    %1566 = vmatprep.subr.mxu0 0.0
    %1567 = vmatpush1.msra.mxu0 0.0
    %1568 = vmatprep.subr.mxu0 0.0
    %1569 = vmatpush1.msra.mxu0 0.0
    %1570 = vmatprep.subr.mxu0 0.0
    %1571 = vmatpush1.msra.mxu0 0.0
    %1572 = vmatprep.subr.mxu0 0.0
    %1573 = vmatpush1.msra.mxu0 0.0
    %1574 = vmatprep.subr.mxu0 0.0
    %1575 = vmatpush1.msra.mxu0 0.0
    %1576 = vmatprep.subr.mxu0 0.0
    %1577 = vmatpush1.msra.mxu0 0.0
    %1578 = vmatprep.subr.mxu0 0.0
    %1579 = vmatpush1.msra.mxu0 0.0
    %1580 = vmatprep.subr.mxu0 0.0
    %1581 = vmatpush1.msra.mxu0 0.0
    %1582 = vmatprep.subr.mxu0 0.0
    %1583 = vmatpush1.msra.mxu0 0.0
    %1584 = vmatprep.subr.mxu0 0.0
    %1585 = vmatpush1.msra.mxu0 0.0
    %1586 = vmatprep.subr.mxu0 0.0
    %1587 = vmatpush1.msra.mxu0 0.0
    %1588 = vmatprep.subr.mxu0 0.0
    %1589 = vmatpush1.msra.mxu0 0.0
    %1590 = vmatprep.subr.mxu0 0.0
    %1591 = vmatpush1.msra.mxu0 0.0
    %1592 = vmatprep.subr.mxu0 0.0
    %1593 = vmatpush1.msra.mxu0 0.0
    %1594 = vmatprep.subr.mxu0 0.0
    %1595 = vmatpush1.msra.mxu0 0.0
    %1596 = vmatprep.subr.mxu0 0.0
    %1597 = vmatpush1.msra.mxu0 0.0
    %1598 = vmatprep.subr.mxu0 0.0
    %1599 = vmatpush1.msra.mxu0 0.0
    %1600 = vmatprep.subr.mxu0 0.0
    %1601 = vmatpush1.msra.mxu0 0.0
    %1602 = vmatprep.subr.mxu0 0.0
    %1603 = vmatpush1.msra.mxu0 0.0
    %1604 = vmatprep.subr.mxu0 0.0
    %1605 = vmatpush1.msra.mxu0 0.0
    %1606 = vmatprep.subr.mxu0 0.0
    %1607 = vmatpush1.msra.mxu0 0.0
    %1608 = vmatprep.subr.mxu0 0.0
    %1609 = vmatpush1.msra.mxu0 0.0
    %1610 = vmatprep.subr.mxu0 0.0
    %1611 = vmatpush1.msra.mxu0 0.0
    %1612 = vmatprep.subr.mxu0 0.0
    %1613 = vmatpush1.msra.mxu0 0.0
    %1614 = vmatprep.subr.mxu0 0.0
    %1615 = vmatpush1.msra.mxu0 0.0
    %1616 = vmatprep.subr.mxu0 0.0
    %1617 = vmatpush1.msra.mxu0 0.0
    %1618 = vmatprep.mubr.f32.mxu0 0.0
    %1619 = vmatmul.mubr.f32.gmra.mrb[0].mxu0 %v1552
    %v1620 = vpop.f32.mrb[0].mxu0
    %v1621 = vadd.f32 0.0, %v1620
    %v1622 = vpop.f32.mrb[0].mxu0
    %v1623 = vadd.f32 0.0, %v1622
    %1624 = vdwg.mxu0
    %1625 = vmatprep.subr.mxu0 %v1548
    %1626 = vmatpush1.msra.mxu0 %v1547
    %1627 = vmatprep.subr.mxu0 0.0
    %1628 = vmatpush1.msra.mxu0 0.0
    %1629 = vmatprep.subr.mxu0 0.0
    %1630 = vmatpush1.msra.mxu0 0.0
    %1631 = vmatprep.subr.mxu0 0.0
    %1632 = vmatpush1.msra.mxu0 0.0
    %1633 = vmatprep.subr.mxu0 0.0
    %1634 = vmatpush1.msra.mxu0 0.0
    %1635 = vmatprep.subr.mxu0 0.0
    %1636 = vmatpush1.msra.mxu0 0.0
    %1637 = vmatprep.subr.mxu0 0.0
    %1638 = vmatpush1.msra.mxu0 0.0
    %1639 = vmatprep.subr.mxu0 0.0
    %1640 = vmatpush1.msra.mxu0 0.0
    %1641 = vmatprep.subr.mxu0 0.0
    %1642 = vmatpush1.msra.mxu0 0.0
    %1643 = vmatprep.subr.mxu0 0.0
    %1644 = vmatpush1.msra.mxu0 0.0
    %1645 = vmatprep.subr.mxu0 0.0
    %1646 = vmatpush1.msra.mxu0 0.0
    %1647 = vmatprep.subr.mxu0 0.0
    %1648 = vmatpush1.msra.mxu0 0.0
    %1649 = vmatprep.subr.mxu0 0.0
    %1650 = vmatpush1.msra.mxu0 0.0
    %1651 = vmatprep.subr.mxu0 0.0
    %1652 = vmatpush1.msra.mxu0 0.0
    %1653 = vmatprep.subr.mxu0 0.0
    %1654 = vmatpush1.msra.mxu0 0.0
    %1655 = vmatprep.subr.mxu0 0.0
    %1656 = vmatpush1.msra.mxu0 0.0
    %1657 = vmatprep.subr.mxu0 0.0
    %1658 = vmatpush1.msra.mxu0 0.0
    %1659 = vmatprep.subr.mxu0 0.0
    %1660 = vmatpush1.msra.mxu0 0.0
    %1661 = vmatprep.subr.mxu0 0.0
    %1662 = vmatpush1.msra.mxu0 0.0
    %1663 = vmatprep.subr.mxu0 0.0
    %1664 = vmatpush1.msra.mxu0 0.0
    %1665 = vmatprep.subr.mxu0 0.0
    %1666 = vmatpush1.msra.mxu0 0.0
    %1667 = vmatprep.subr.mxu0 0.0
    %1668 = vmatpush1.msra.mxu0 0.0
    %1669 = vmatprep.subr.mxu0 0.0
    %1670 = vmatpush1.msra.mxu0 0.0
    %1671 = vmatprep.subr.mxu0 0.0
    %1672 = vmatpush1.msra.mxu0 0.0
    %1673 = vmatprep.subr.mxu0 0.0
    %1674 = vmatpush1.msra.mxu0 0.0
    %1675 = vmatprep.subr.mxu0 0.0
    %1676 = vmatpush1.msra.mxu0 0.0
    %1677 = vmatprep.subr.mxu0 0.0
    %1678 = vmatpush1.msra.mxu0 0.0
    %1679 = vmatprep.subr.mxu0 0.0
    %1680 = vmatpush1.msra.mxu0 0.0
    %1681 = vmatprep.subr.mxu0 0.0
    %1682 = vmatpush1.msra.mxu0 0.0
    %1683 = vmatprep.subr.mxu0 0.0
    %1684 = vmatpush1.msra.mxu0 0.0
    %1685 = vmatprep.subr.mxu0 0.0
    %1686 = vmatpush1.msra.mxu0 0.0
    %1687 = vmatprep.subr.mxu0 0.0
    %1688 = vmatpush1.msra.mxu0 0.0
    %1689 = vmatprep.mubr.f32.mxu0 0.0
    %1690 = vmatmul.mubr.f32.gmra.mrb[0].mxu0 %v1552
    %v1691 = vpop.f32.mrb[0].mxu0
    %v1692 = vadd.f32 0.0, %v1691
    %v1693 = vpop.f32.mrb[0].mxu0
    %v1694 = vadd.f32 0.0, %v1693
    %1695 = vdwg.mxu0
    %v1696 = vadd.f32 %v1505, %v1621
    %v1697 = vadd.f32 %v1506, %v1623
    %v1698 = vadd.f32 %v1507, %v1692
    %v1699 = vadd.f32 %v1508, %v1694
    %v1700 = vld [vmem:[%s2] sm:$0xff]
    %1702 = vset.pattern.permute.xlu0 0
    %1703 = vperm.xlu0 %1702, %v1700
    %v1704 = vpop.permute.xlu0 %1703
    %v1706 = vadd.f32 %v1696, %v1704
    %v1707 = vadd.f32 %v1697, %v1704
    %v1708 = vadd.f32 %v1698, %v1704
    %v1709 = vadd.f32 %v1699, %v1704
    %v1710 = vmax.f32 %v1706, 0.0
    %v1711 = vmax.f32 %v1707, 0.0
    %v1712 = vmax.f32 %v1708, 0.0
    %v1713 = vmax.f32 %v1709, 0.0
    %v1714 = vld [vmem:[%s3] sm:$0xff]
    %v1715 = vld [vmem:[%s3 + $0x8] sm:$0xff]
    %v1716 = vld [vmem:[%s3 + $0x10] sm:$0xff]
    %v1717 = vld [vmem:[%s3 + $0x18] sm:$0xff]
    %v1718 = vld [vmem:[%s3 + $0x20] sm:$0xff]
    %v1719 = vld [vmem:[%s3 + $0x28] sm:$0xff]
    %v1720 = vld [vmem:[%s4] sm:$0xff]
    %v1721 = vld [vmem:[%s4 + $0x8] sm:$0xff]
    %v1722 = vld [vmem:[%s4 + $0x10] sm:$0xff]
    %v1723 = vld [vmem:[%s4 + $0x18] sm:$0xff]
    %v1724 = vld [vmem:[%s4 + $0x20] sm:$0xff]
    %v1725 = vld [vmem:[%s4 + $0x28] sm:$0xff]
    %1727 = vset.pattern.permute.xlu0 0
    %1728 = vperm.xlu0 %1727, %v1720
    %v1729 = vpop.permute.xlu0 %1728
    %1732 = vset.pattern.permute.xlu0 0
    %1733 = vperm.xlu0 %1732, %v1721
    %v1734 = vpop.permute.xlu0 %1733
    %1737 = vset.pattern.permute.xlu0 0
    %1738 = vperm.xlu0 %1737, %v1722
    %v1739 = vpop.permute.xlu0 %1738
    %1742 = vset.pattern.permute.xlu0 0
    %1743 = vperm.xlu0 %1742, %v1723
    %v1744 = vpop.permute.xlu0 %1743
    %1747 = vset.pattern.permute.xlu0 0
    %1748 = vperm.xlu0 %1747, %v1724
    %v1749 = vpop.permute.xlu0 %1748
    %1752 = vset.pattern.permute.xlu0 0
    %1753 = vperm.xlu0 %1752, %v1725
    %v1754 = vpop.permute.xlu0 %1753
    %v1757 = vsel %vm112, %v1714, 0
    %v1760 = vsel %vm112, %v1715, 0
    %v1763 = vsel %vm112, %v1716, 0
    %v1766 = vsel %vm112, %v1717, 0
    %v1769 = vsel %vm112, %v1718, 0
    %v1772 = vsel %vm112, %v1719, 0
    %1774 = vmatprep.subr.mxu0 %v1711
    %1775 = vmatpush1.msra.mxu0 %v1710
    %1776 = vmatprep.subr.mxu0 0.0
    %1777 = vmatpush1.msra.mxu0 0.0
    %1778 = vmatprep.subr.mxu0 0.0
    %1779 = vmatpush1.msra.mxu0 0.0
    %1780 = vmatprep.subr.mxu0 0.0
    %1781 = vmatpush1.msra.mxu0 0.0
    %1782 = vmatprep.subr.mxu0 0.0
    %1783 = vmatpush1.msra.mxu0 0.0
    %1784 = vmatprep.subr.mxu0 0.0
    %1785 = vmatpush1.msra.mxu0 0.0
    %1786 = vmatprep.subr.mxu0 0.0
    %1787 = vmatpush1.msra.mxu0 0.0
    %1788 = vmatprep.subr.mxu0 0.0
    %1789 = vmatpush1.msra.mxu0 0.0
    %1790 = vmatprep.subr.mxu0 0.0
    %1791 = vmatpush1.msra.mxu0 0.0
    %1792 = vmatprep.subr.mxu0 0.0
    %1793 = vmatpush1.msra.mxu0 0.0
    %1794 = vmatprep.subr.mxu0 0.0
    %1795 = vmatpush1.msra.mxu0 0.0
    %1796 = vmatprep.subr.mxu0 0.0
    %1797 = vmatpush1.msra.mxu0 0.0
    %1798 = vmatprep.subr.mxu0 0.0
    %1799 = vmatpush1.msra.mxu0 0.0
    %1800 = vmatprep.subr.mxu0 0.0
    %1801 = vmatpush1.msra.mxu0 0.0
    %1802 = vmatprep.subr.mxu0 0.0
    %1803 = vmatpush1.msra.mxu0 0.0
    %1804 = vmatprep.subr.mxu0 0.0
    %1805 = vmatpush1.msra.mxu0 0.0
    %1806 = vmatprep.subr.mxu0 0.0
    %1807 = vmatpush1.msra.mxu0 0.0
    %1808 = vmatprep.subr.mxu0 0.0
    %1809 = vmatpush1.msra.mxu0 0.0
    %1810 = vmatprep.subr.mxu0 0.0
    %1811 = vmatpush1.msra.mxu0 0.0
    %1812 = vmatprep.subr.mxu0 0.0
    %1813 = vmatpush1.msra.mxu0 0.0
    %1814 = vmatprep.subr.mxu0 0.0
    %1815 = vmatpush1.msra.mxu0 0.0
    %1816 = vmatprep.subr.mxu0 0.0
    %1817 = vmatpush1.msra.mxu0 0.0
    %1818 = vmatprep.subr.mxu0 0.0
    %1819 = vmatpush1.msra.mxu0 0.0
    %1820 = vmatprep.subr.mxu0 0.0
    %1821 = vmatpush1.msra.mxu0 0.0
    %1822 = vmatprep.subr.mxu0 0.0
    %1823 = vmatpush1.msra.mxu0 0.0
    %1824 = vmatprep.subr.mxu0 0.0
    %1825 = vmatpush1.msra.mxu0 0.0
    %1826 = vmatprep.subr.mxu0 0.0
    %1827 = vmatpush1.msra.mxu0 0.0
    %1828 = vmatprep.subr.mxu0 0.0
    %1829 = vmatpush1.msra.mxu0 0.0
    %1830 = vmatprep.subr.mxu0 0.0
    %1831 = vmatpush1.msra.mxu0 0.0
    %1832 = vmatprep.subr.mxu0 0.0
    %1833 = vmatpush1.msra.mxu0 0.0
    %1834 = vmatprep.subr.mxu0 0.0
    %1835 = vmatpush1.msra.mxu0 0.0
    %1836 = vmatprep.subr.mxu0 0.0
    %1837 = vmatpush1.msra.mxu0 0.0
    %1838 = vmatprep.mubr.f32.mxu0 0.0
    %1839 = vmatmul.mubr.f32.gmra.mrb[0].mxu0 %v1757
    %v1840 = vpop.f32.mrb[0].mxu0
    %v1841 = vadd.f32 %v1729, %v1840
    %v1842 = vpop.f32.mrb[0].mxu0
    %v1843 = vadd.f32 %v1729, %v1842
    %1844 = vmatprep.mubr.f32.mxu0 0.0
    %1845 = vmatmul.mubr.f32.gmra.mrb[0].mxu0 %v1760
    %v1846 = vpop.f32.mrb[0].mxu0
    %v1847 = vadd.f32 %v1734, %v1846
    %v1848 = vpop.f32.mrb[0].mxu0
    %v1849 = vadd.f32 %v1734, %v1848
    %1850 = vmatprep.mubr.f32.mxu0 0.0
    %1851 = vmatmul.mubr.f32.gmra.mrb[0].mxu0 %v1763
    %v1852 = vpop.f32.mrb[0].mxu0
    %v1853 = vadd.f32 %v1739, %v1852
    %v1854 = vpop.f32.mrb[0].mxu0
    %v1855 = vadd.f32 %v1739, %v1854
    %1856 = vmatprep.mubr.f32.mxu0 0.0
    %1857 = vmatmul.mubr.f32.gmra.mrb[0].mxu0 %v1766
    %v1858 = vpop.f32.mrb[0].mxu0
    %v1859 = vadd.f32 %v1744, %v1858
    %v1860 = vpop.f32.mrb[0].mxu0
    %v1861 = vadd.f32 %v1744, %v1860
    %1862 = vmatprep.mubr.f32.mxu0 0.0
    %1863 = vmatmul.mubr.f32.gmra.mrb[0].mxu0 %v1769
    %v1864 = vpop.f32.mrb[0].mxu0
    %v1865 = vadd.f32 %v1749, %v1864
    %v1866 = vpop.f32.mrb[0].mxu0
    %v1867 = vadd.f32 %v1749, %v1866
    %1868 = vmatprep.mubr.f32.mxu0 0.0
    %1869 = vmatmul.mubr.f32.gmra.mrb[0].mxu0 %v1772
    %v1870 = vpop.f32.mrb[0].mxu0
    %v1871 = vadd.f32 %v1754, %v1870
    %v1872 = vpop.f32.mrb[0].mxu0
    %v1873 = vadd.f32 %v1754, %v1872
    %1874 = vdwg.mxu0
    %1875 = vmatprep.subr.mxu0 %v1713
    %1876 = vmatpush1.msra.mxu0 %v1712
    %1877 = vmatprep.subr.mxu0 0.0
    %1878 = vmatpush1.msra.mxu0 0.0
    %1879 = vmatprep.subr.mxu0 0.0
    %1880 = vmatpush1.msra.mxu0 0.0
    %1881 = vmatprep.subr.mxu0 0.0
    %1882 = vmatpush1.msra.mxu0 0.0
    %1883 = vmatprep.subr.mxu0 0.0
    %1884 = vmatpush1.msra.mxu0 0.0
    %1885 = vmatprep.subr.mxu0 0.0
    %1886 = vmatpush1.msra.mxu0 0.0
    %1887 = vmatprep.subr.mxu0 0.0
    %1888 = vmatpush1.msra.mxu0 0.0
    %1889 = vmatprep.subr.mxu0 0.0
    %1890 = vmatpush1.msra.mxu0 0.0
    %1891 = vmatprep.subr.mxu0 0.0
    %1892 = vmatpush1.msra.mxu0 0.0
    %1893 = vmatprep.subr.mxu0 0.0
    %1894 = vmatpush1.msra.mxu0 0.0
    %1895 = vmatprep.subr.mxu0 0.0
    %1896 = vmatpush1.msra.mxu0 0.0
    %1897 = vmatprep.subr.mxu0 0.0
    %1898 = vmatpush1.msra.mxu0 0.0
    %1899 = vmatprep.subr.mxu0 0.0
    %1900 = vmatpush1.msra.mxu0 0.0
    %1901 = vmatprep.subr.mxu0 0.0
    %1902 = vmatpush1.msra.mxu0 0.0
    %1903 = vmatprep.subr.mxu0 0.0
    %1904 = vmatpush1.msra.mxu0 0.0
    %1905 = vmatprep.subr.mxu0 0.0
    %1906 = vmatpush1.msra.mxu0 0.0
    %1907 = vmatprep.subr.mxu0 0.0
    %1908 = vmatpush1.msra.mxu0 0.0
    %1909 = vmatprep.subr.mxu0 0.0
    %1910 = vmatpush1.msra.mxu0 0.0
    %1911 = vmatprep.subr.mxu0 0.0
    %1912 = vmatpush1.msra.mxu0 0.0
    %1913 = vmatprep.subr.mxu0 0.0
    %1914 = vmatpush1.msra.mxu0 0.0
    %1915 = vmatprep.subr.mxu0 0.0
    %1916 = vmatpush1.msra.mxu0 0.0
    %1917 = vmatprep.subr.mxu0 0.0
    %1918 = vmatpush1.msra.mxu0 0.0
    %1919 = vmatprep.subr.mxu0 0.0
    %1920 = vmatpush1.msra.mxu0 0.0
    %1921 = vmatprep.subr.mxu0 0.0
    %1922 = vmatpush1.msra.mxu0 0.0
    %1923 = vmatprep.subr.mxu0 0.0
    %1924 = vmatpush1.msra.mxu0 0.0
    %1925 = vmatprep.subr.mxu0 0.0
    %1926 = vmatpush1.msra.mxu0 0.0
    %1927 = vmatprep.subr.mxu0 0.0
    %1928 = vmatpush1.msra.mxu0 0.0
    %1929 = vmatprep.subr.mxu0 0.0
    %1930 = vmatpush1.msra.mxu0 0.0
    %1931 = vmatprep.subr.mxu0 0.0
    %1932 = vmatpush1.msra.mxu0 0.0
    %1933 = vmatprep.subr.mxu0 0.0
    %1934 = vmatpush1.msra.mxu0 0.0
    %1935 = vmatprep.subr.mxu0 0.0
    %1936 = vmatpush1.msra.mxu0 0.0
    %1937 = vmatprep.subr.mxu0 0.0
    %1938 = vmatpush1.msra.mxu0 0.0
    %1939 = vmatprep.mubr.f32.mxu0 0.0
    %1940 = vmatmul.mubr.f32.gmra.mrb[0].mxu0 %v1757
    %v1941 = vpop.f32.mrb[0].mxu0
    %v1942 = vadd.f32 %v1729, %v1941
    %v1943 = vpop.f32.mrb[0].mxu0
    %v1944 = vadd.f32 %v1729, %v1943
    %1945 = vmatprep.mubr.f32.mxu0 0.0
    %1946 = vmatmul.mubr.f32.gmra.mrb[0].mxu0 %v1760
    %v1947 = vpop.f32.mrb[0].mxu0
    %v1948 = vadd.f32 %v1734, %v1947
    %v1949 = vpop.f32.mrb[0].mxu0
    %v1950 = vadd.f32 %v1734, %v1949
    %1951 = vmatprep.mubr.f32.mxu0 0.0
    %1952 = vmatmul.mubr.f32.gmra.mrb[0].mxu0 %v1763
    %v1953 = vpop.f32.mrb[0].mxu0
    %v1954 = vadd.f32 %v1739, %v1953
    %v1955 = vpop.f32.mrb[0].mxu0
    %v1956 = vadd.f32 %v1739, %v1955
    %1957 = vmatprep.mubr.f32.mxu0 0.0
    %1958 = vmatmul.mubr.f32.gmra.mrb[0].mxu0 %v1766
    %v1959 = vpop.f32.mrb[0].mxu0
    %v1960 = vadd.f32 %v1744, %v1959
    %v1961 = vpop.f32.mrb[0].mxu0
    %v1962 = vadd.f32 %v1744, %v1961
    %1963 = vmatprep.mubr.f32.mxu0 0.0
    %1964 = vmatmul.mubr.f32.gmra.mrb[0].mxu0 %v1769
    %v1965 = vpop.f32.mrb[0].mxu0
    %v1966 = vadd.f32 %v1749, %v1965
    %v1967 = vpop.f32.mrb[0].mxu0
    %v1968 = vadd.f32 %v1749, %v1967
    %1969 = vmatprep.mubr.f32.mxu0 0.0
    %1970 = vmatmul.mubr.f32.gmra.mrb[0].mxu0 %v1772
    %v1971 = vpop.f32.mrb[0].mxu0
    %v1972 = vadd.f32 %v1754, %v1971
    %v1973 = vpop.f32.mrb[0].mxu0
    %v1974 = vadd.f32 %v1754, %v1973
    %1975 = vdwg.mxu0
    %1976 = vst [vmem:[#allocation2] sm:$0xff] %v1841
    %1977 = vst [vmem:[#allocation2 + $0x8] sm:$0xff] %v1843
    %1978 = vst [vmem:[#allocation2 + $0x10] sm:$0xff] %v1942
    %1979 = vst [vmem:[#allocation2 + $0x18] sm:$0xff] %v1944
    %1980 = vst [vmem:[#allocation2 + $0x20] sm:$0xff] %v1847
    %1981 = vst [vmem:[#allocation2 + $0x28] sm:$0xff] %v1849
    %1982 = vst [vmem:[#allocation2 + $0x30] sm:$0xff] %v1948
    %1983 = vst [vmem:[#allocation2 + $0x38] sm:$0xff] %v1950
    %1984 = vst [vmem:[#allocation2 + $0x40] sm:$0xff] %v1853
    %1985 = vst [vmem:[#allocation2 + $0x48] sm:$0xff] %v1855
    %1986 = vst [vmem:[#allocation2 + $0x50] sm:$0xff] %v1954
    %1987 = vst [vmem:[#allocation2 + $0x58] sm:$0xff] %v1956
    %1988 = vst [vmem:[#allocation2 + $0x60] sm:$0xff] %v1859
    %1989 = vst [vmem:[#allocation2 + $0x68] sm:$0xff] %v1861
    %1990 = vst [vmem:[#allocation2 + $0x70] sm:$0xff] %v1960
    %1991 = vst [vmem:[#allocation2 + $0x78] sm:$0xff] %v1962
    %1992 = vst [vmem:[#allocation2 + $0x80] sm:$0xff] %v1865
    %1993 = vst [vmem:[#allocation2 + $0x88] sm:$0xff] %v1867
    %1994 = vst [vmem:[#allocation2 + $0x90] sm:$0xff] %v1966
    %1995 = vst [vmem:[#allocation2 + $0x98] sm:$0xff] %v1968
    %1996 = vst [vmem:[#allocation2 + $0xa0] sm:$0xff] %v1871
    %1997 = vst [vmem:[#allocation2 + $0xa8] sm:$0xff] %v1873
    %1998 = vst [vmem:[#allocation2 + $0xb0] sm:$0xff] %v1972
    %1999 = vst [vmem:[#allocation2 + $0xb8] sm:$0xff] %v1974
    // Predicated region
    $region26: #{tpu_custom_call.1} parent=1 // pred_check
      _
    $region27: #{tpu_custom_call.1} parent=1 // pred_check_branch
      %2001 = sbr.rel (0) target = $region29
    $region28: #{tpu_custom_call.1} parent=1 // pred_region
      %s2003 = ssub.s32 3072, 3072
      %2004 = vsyncadd [#allocation3], %s2003
      %s2005 = sshll.u32 [#allocation2], 4
      %s2006 = int_to_ptr.vmem [resolvable:$true] %s2005
      %2011 = dma.vmem_to_hbm [thread:$0]  %s2006, 3072, %s6, [#allocation3], 512, 512, 32
    $region29: #{tpu_custom_call.1} parent=1 // pred_fallthru
      _
    // Predicated region
    $region30: #{tpu_custom_call.1} parent=1 // pred_check
      _
    $region31: #{tpu_custom_call.1} parent=1 // pred_check_branch
      %2013 = sbr.rel (0) target = $region33
    $region32: #{tpu_custom_call.1} parent=1 // pred_region
      %2014 = dma.done [#allocation3], 3072
    $region33: #{tpu_custom_call.1} parent=1 // pred_fallthru
      _
    %2015 = vsyncpa [#allocation3], 1

</llo_original>
